<compile_context>
chip_gen: v5e
topology: v5e:2x2
jax: 0.10.0
libtpu: 0.0.40
codegen_flags: <defaults>
</compile_context>

<pallas_src>
from dataclasses import dataclass

import jax
import jax.numpy as jnp
import numpy as np
from jax.experimental import pallas as pl
from jax.experimental.pallas import tpu as pltpu

C0 = 0.28209479177387814  # RGB2SH constant


@dataclass
class GaussianAdapterCfg:
    gaussian_scale_min: float
    gaussian_scale_max: float
    sh_degree: int


def _sh_mask(sh_degree):
    d_sh = (sh_degree + 1) ** 2
    mask = np.ones((d_sh,), np.float32)
    for degree in range(1, sh_degree + 1):
        mask[degree ** 2:(degree + 1) ** 2] = 0.1 * 0.25 ** degree
    return mask


def _pick_g_tile(G, requested):
    """Largest lane-tile (multiple of 128, sublane friendly) dividing G."""
    assert G % 128 == 0, "gaussian count (h*w*srf*spp) must be a multiple of 128"
    gt_total = G // 128
    requested_gt = max(int(requested) // 128, 1)
    valid = [gt for gt in range(1, gt_total + 1)
             if gt_total % gt == 0 and (gt % 8 == 0 or gt == gt_total)]
    under = [gt for gt in valid if gt <= requested_gt]
    gt = max(under) if under else min(valid)
    return gt * 128


def _make_kernel(d_sh, sh_mask_np, scale_min, scale_max, eps, d_in):
    n_sh = 3 * d_sh
    inv_c0 = 1.0 / C0
    mask_rest = (np.asarray(sh_mask_np, np.float32)[1:].reshape(d_sh - 1, 1, 1)
                 if d_sh > 1 else None)
    # fused output row offsets: means | cov | scales | rot | sh
    MEAN0, COV0, SCALE0, ROT0, SH0 = 0, 3, 12, 15, 19

    def kernel(ext_s, kinv_s, x_ref, o_ref):
        bv = pl.program_id(0)

        # camera matrices as SMEM scalars (no vreg broadcast materialization)
        ea = [[ext_s[bv, 4 * a + m] for m in range(4)] for a in range(3)]
        kk = [[kinv_s[bv, 3 * i + j] for j in range(3)] for i in range(3)]

        def row(i):            # (gt, 128) sublane-dense gaussian tile
            return x_ref[0, i]

        def rows(a, b):
            return x_ref[0, a:b]

        # ---- scales: clamp(softplus(x - 4), min, max) -----------------------
        s = jnp.clip(jax.nn.softplus(rows(0, 3) - 4.0), scale_min, scale_max)
        o_ref[0, SCALE0:SCALE0 + 3] = s

        # ---- rotations: q * reciprocal(||q|| + eps)  (EUP, no divides) ------
        qi, qj, qk, qr = row(3), row(4), row(5), row(6)
        qs = qi * qi + qj * qj + qk * qk + qr * qr
        inv_qn = pl.reciprocal(jnp.sqrt(qs) + eps, approx=False)
        qi, qj, qk, qr = qi * inv_qn, qj * inv_qn, qk * inv_qn, qr * inv_qn
        o_ref[0, ROT0 + 0] = qi
        o_ref[0, ROT0 + 1] = qj
        o_ref[0, ROT0 + 2] = qk
        o_ref[0, ROT0 + 3] = qr

        # ---- quaternion (xyzw) -> rotation matrix ---------------------------
        two_s = 2.0 * pl.reciprocal(qs * (inv_qn * inv_qn) + 1e-8, approx=False)
        R = [
            [1 - two_s * (qj * qj + qk * qk), two_s * (qi * qj - qk * qr), two_s * (qi * qk + qj * qr)],
            [two_s * (qi * qj + qk * qr), 1 - two_s * (qi * qi + qk * qk), two_s * (qj * qk - qi * qr)],
            [two_s * (qi * qk - qj * qr), two_s * (qj * qk + qi * qr), 1 - two_s * (qi * qi + qj * qj)],
        ]

        # ---- covariance: Rc (R diag(s^2) R^T) Rc^T, symmetry exploited ------
        s2 = [s[0] * s[0], s[1] * s[1], s[2] * s[2]]
        Rs = [[R[a][k] * s2[k] for k in range(3)] for a in range(3)]
        covl = [[None] * 3 for _ in range(3)]
        for a in range(3):
            for b2 in range(a, 3):
                v_ = Rs[a][0] * R[b2][0] + Rs[a][1] * R[b2][1] + Rs[a][2] * R[b2][2]
                covl[a][b2] = v_
                covl[b2][a] = v_
        # staged: tmp = Rc @ covl  (scalar * vector), covw = tmp @ Rc^T (symmetric)
        tmp = [[ea[a][0] * covl[0][n] + ea[a][1] * covl[1][n] + ea[a][2] * covl[2][n]
                for n in range(3)] for a in range(3)]
        covw = [[None] * 3 for _ in range(3)]
        for a in range(3):
            for b2 in range(a, 3):
                v_ = tmp[a][0] * ea[b2][0] + tmp[a][1] * ea[b2][1] + tmp[a][2] * ea[b2][2]
                covw[a][b2] = v_
                covw[b2][a] = v_
        for a in range(3):
            for b2 in range(3):
                o_ref[0, COV0 + 3 * a + b2] = covw[a][b2]

        # ---- means: unproject pixel, rsqrt-normalize, rotate to world, march
        x, y, depth = row(d_in), row(d_in + 1), row(d_in + 2)
        d0 = kk[0][0] * x + kk[0][1] * y + kk[0][2]
        d1 = kk[1][0] * x + kk[1][1] * y + kk[1][2]
        d2 = kk[2][0] * x + kk[2][1] * y + kk[2][2]
        inv_dn = jax.lax.rsqrt(d0 * d0 + d1 * d1 + d2 * d2)
        d0, d1, d2 = d0 * inv_dn, d1 * inv_dn, d2 * inv_dn
        for a in range(3):
            dw = ea[a][0] * d0 + ea[a][1] * d1 + ea[a][2] * d2
            o_ref[0, MEAN0 + a] = ea[a][3] + dw * depth

        # ---- spherical harmonics: masked block + DC injection ---------------
        for c in range(3):
            dc = (row(d_in + 3 + c) - 0.5) * inv_c0          # RGB2SH
            o_ref[0, SH0 + c * d_sh] = row(7 + c * d_sh) + dc  # sh_mask[0] == 1
            if d_sh > 1:
                blk = rows(7 + c * d_sh + 1, 7 + (c + 1) * d_sh) * jnp.asarray(mask_rest)
                o_ref[0, SH0 + c * d_sh + 1:SH0 + (c + 1) * d_sh] = blk
        # TODO(synk): rotate_sh (e3nn wigner_D) for sh_degree > 0 has no clean
        # Pallas equivalent; degree-0 rotation is the identity and is exact here.

    return kernel


def gaussian_adapter_pallas(extrinsics, intrinsics, coordinates, depths,
                            opacities, raw_gaussians, input_images, cfg,
                            eps=1e-8, g_tile=4096):
    b, v = extrinsics.shape[:2]
    d_sh = (cfg.sh_degree + 1) ** 2
    n_sh = 3 * d_sh
    d_in = 7 + n_sh
    _, _, r, srf, spp = opacities.shape
    h, w = input_images.shape[-2:]
    assert r == h * w
    G = r * srf * spp
    BV = b * v
    F_in = d_in + 6          # raw(d_in) | xy(2) | depth(1) | rgb(3)  -> one DMA
    F_out = 19 + n_sh        # means(3) | cov(9) | scales(3) | rot(4) | sh(n_sh)

    g_tile = _pick_g_tile(G, min(int(g_tile), G))
    gt = g_tile // 128
    n_gblk = (G // 128) // gt

    f32 = jnp.float32
    # camera matrices -> SMEM scalar prefetch (flattened row-major)
    ext_s = extrinsics.reshape(BV, 16).astype(f32)
    kinv_s = jnp.linalg.inv(intrinsics.reshape(BV, 3, 3).astype(f32)).reshape(BV, 9)

    # Fused feature-major per-gaussian input block.
    # TODO(synk): a producer emitting feature-major [BV, F, G] directly would
    # remove this transpose+concat HBM round-trip entirely.
    raw_t = jnp.transpose(raw_gaussians.reshape(BV, G, d_in), (0, 2, 1)).astype(f32)
    xy_t = jnp.transpose(coordinates.reshape(BV, G, 2), (0, 2, 1)).astype(f32)
    depth_t = depths.reshape(BV, 1, G).astype(f32)
    rgb_t = input_images.reshape(BV, 3, h * w).astype(f32)
    if srf * spp > 1:
        # broadcast per-pixel rgb over (srf, spp); folded into the concat write
        rgb_t = jnp.broadcast_to(rgb_t[:, :, :, None],
                                 (BV, 3, h * w, srf * spp)).reshape(BV, 3, G)
    fused = jnp.concatenate([raw_t, xy_t, depth_t, rgb_t], axis=1)
    fused = fused.reshape(BV, F_in, G // 128, 128)   # sublane-dense gaussian tiles

    kernel = _make_kernel(d_sh, _sh_mask(cfg.sh_degree),
                          float(cfg.gaussian_scale_min),
                          float(cfg.gaussian_scale_max), float(eps), d_in)

    blk_in = pl.BlockSpec((1, F_in, gt, 128), lambda bv, g, es, ks: (bv, 0, g, 0))
    blk_out = pl.BlockSpec((1, F_out, gt, 128), lambda bv, g, es, ks: (bv, 0, g, 0))

    cp_kwargs = dict(dimension_semantics=("parallel", "parallel"))
    dbuf_bytes = (F_in + F_out) * g_tile * 4 * 2     # double-buffered in + out
    if dbuf_bytes > 12 * 1024 * 1024:
        cp_kwargs["vmem_limit_bytes"] = int(dbuf_bytes + (8 << 20))

    out = pl.pallas_call(
        kernel,
        out_shape=jax.ShapeDtypeStruct((BV, F_out, G // 128, 128), f32),
        grid_spec=pltpu.PrefetchScalarGridSpec(
            num_scalar_prefetch=2,
            grid=(BV, n_gblk),
            in_specs=[blk_in],
            out_specs=blk_out,
        ),
        compiler_params=pltpu.CompilerParams(**cp_kwargs),
    )(ext_s, kinv_s, fused)

    batch = (b, v, r, srf, spp)
    # single output transpose (instead of one per field), then cheap slices
    flat = jnp.transpose(out.reshape(BV, F_out, G), (0, 2, 1)).reshape(*batch, F_out)
    return dict(
        means=flat[..., 0:3],
        covariances=flat[..., 3:12].reshape(*batch, 3, 3),
        scales=flat[..., 12:15],
        rotations=flat[..., 15:19],
        harmonics=flat[..., 19:19 + n_sh].reshape(*batch, 3, d_sh),
        opacities=opacities,
    )


def gaussian_adapter_reference(extrinsics, intrinsics, coordinates, depths,
                               opacities, raw_gaussians, input_images, cfg,
                               eps=1e-8):
    """Pure-JAX mirror of the PyTorch forward (sh_degree == 0)."""
    d_sh = (cfg.sh_degree + 1) ** 2
    b, v, r, srf, spp = opacities.shape
    mask = jnp.asarray(_sh_mask(cfg.sh_degree))

    scales = raw_gaussians[..., 0:3]
    rotations = raw_gaussians[..., 3:7]
    sh = raw_gaussians[..., 7:]
    scales = jnp.clip(jax.nn.softplus(scales - 4.0),
                      cfg.gaussian_scale_min, cfg.gaussian_scale_max)
    rotations = rotations / (jnp.linalg.norm(rotations, axis=-1, keepdims=True) + eps)
    sh = sh.reshape(*sh.shape[:-1], 3, d_sh)
    sh = jnp.broadcast_to(sh, (*opacities.shape, 3, d_sh)) * mask
    imgs = jnp.transpose(input_images, (0, 1, 3, 4, 2)).reshape(b, v, r, 1, 1, 3)
    imgs = jnp.broadcast_to(imgs, (*opacities.shape, 3))
    sh = sh.at[..., 0].add((imgs - 0.5) / C0)

    qi, qj, qk, qr = [rotations[..., i] for i in range(4)]
    two_s = 2.0 / (jnp.sum(rotations * rotations, axis=-1) + 1e-8)
    R = jnp.stack([
        1 - two_s * (qj * qj + qk * qk), two_s * (qi * qj - qk * qr), two_s * (qi * qk + qj * qr),
        two_s * (qi * qj + qk * qr), 1 - two_s * (qi * qi + qk * qk), two_s * (qj * qk - qi * qr),
        two_s * (qi * qk - qj * qr), two_s * (qj * qk + qi * qr), 1 - two_s * (qi * qi + qj * qj),
    ], axis=-1).reshape(*rotations.shape[:-1], 3, 3)
    S = scales[..., :, None] * jnp.eye(3, dtype=scales.dtype)
    cov = R @ S @ jnp.swapaxes(S, -1, -2) @ jnp.swapaxes(R, -1, -2)
    c2w = extrinsics[:, :, None, None, None, :3, :3]
    cov = c2w @ cov @ jnp.swapaxes(c2w, -1, -2)

    kinv = jnp.linalg.inv(intrinsics)[:, :, None, None, None]
    coords_h = jnp.concatenate(
        [coordinates, jnp.ones_like(coordinates[..., :1])], axis=-1)
    dirs = jnp.einsum('...ij,...j->...i', kinv, coords_h)
    dirs = dirs / jnp.linalg.norm(dirs, axis=-1, keepdims=True)
    dirs_w = jnp.einsum('...ij,...j->...i', c2w, dirs)
    origins = jnp.broadcast_to(
        extrinsics[:, :, None, None, None, :3, 3], dirs_w.shape)
    means = origins + dirs_w * depths[..., None]

    harmonics = sh  # rotate_sh is the identity for sh_degree == 0
    return dict(means=means, covariances=cov, scales=scales,
                rotations=rotations, harmonics=harmonics, opacities=opacities)


if __name__ == "__main__":
    cfg = GaussianAdapterCfg(gaussian_scale_min=1e-3,
                             gaussian_scale_max=0.3,
                             sh_degree=0)
    b, v, h, w, srf, spp = 1, 2, 16, 16, 1, 1
    r = h * w
    d_sh = (cfg.sh_degree + 1) ** 2
    d_in = 7 + 3 * d_sh

    key = jax.random.PRNGKey(0)
    ks = jax.random.split(key, 7)
    raw_gaussians = jax.random.normal(ks[0], (b, v, r, srf, spp, d_in), jnp.float32)
    coordinates = jax.random.uniform(ks[1], (b, v, r, srf, spp, 2), jnp.float32)
    depths = jax.random.uniform(ks[2], (b, v, r, srf, spp), jnp.float32,
                                minval=1.0, maxval=5.0)
    opacities = jax.random.uniform(ks[3], (b, v, r, srf, spp), jnp.float32)
    input_images = jax.random.uniform(ks[4], (b, v, 3, h, w), jnp.float32)

    # deterministic camera-to-world extrinsics (proper rotation + translation)
    q = jax.random.normal(ks[5], (b, v, 4), jnp.float32)
    q = q / jnp.linalg.norm(q, axis=-1, keepdims=True)
    qi, qj, qk, qr = [q[..., i] for i in range(4)]
    Rc = jnp.stack([
        1 - 2 * (qj * qj + qk * qk), 2 * (qi * qj - qk * qr), 2 * (qi * qk + qj * qr),
        2 * (qi * qj + qk * qr), 1 - 2 * (qi * qi + qk * qk), 2 * (qj * qk - qi * qr),
        2 * (qi * qk - qj * qr), 2 * (qj * qk + qi * qr), 1 - 2 * (qi * qi + qj * qj),
    ], axis=-1).reshape(b, v, 3, 3)
    t = jax.random.normal(ks[6], (b, v, 3, 1), jnp.float32)
    bottom = jnp.broadcast_to(jnp.array([0., 0., 0., 1.], jnp.float32), (b, v, 1, 4))
    extrinsics = jnp.concatenate([jnp.concatenate([Rc, t], axis=-1), bottom], axis=-2)
    intrinsics = jnp.broadcast_to(
        jnp.array([[1.0, 0.0, 0.5], [0.0, 1.0, 0.5], [0.0, 0.0, 1.0]], jnp.float32),
        (b, v, 3, 3))

    out = gaussian_adapter_pallas(extrinsics, intrinsics, coordinates, depths,
                                  opacities, raw_gaussians, input_images, cfg)
    out = jax.tree_util.tree_map(jax.block_until_ready, out)

    ref = gaussian_adapter_reference(extrinsics, intrinsics, coordinates, depths,
                                     opacities, raw_gaussians, input_images, cfg)

    for name in ("means", "covariances", "scales", "rotations", "harmonics"):
        np.testing.assert_allclose(np.asarray(out[name]), np.asarray(ref[name]),
                                   rtol=1e-4, atol=1e-5, err_msg=name)

    print("KERNEL_OK")
</pallas_src>

<mosaic_0001>
module attributes {stable_mosaic.version = 11 : i64} {
  func.func @kernel(%arg0: i32, %arg1: i32, %arg2: memref<2x16xf32, #tpu.memory_space<smem>>, %arg3: memref<2x9xf32, #tpu.memory_space<smem>>, %arg4: memref<1x16x2x128xf32, #tpu.memory_space<vmem>>, %arg5: memref<1x22x2x128xf32, #tpu.memory_space<vmem>>) attributes {dimension_semantics = [#tpu.dimension_semantics<parallel>, #tpu.dimension_semantics<parallel>], iteration_bounds = array<i64: 2, 1>, scalar_prefetch = 2 : i64, scratch_operands = 0 : i64, tpu.core_type = #tpu.core_type<tc>, window_params = [{transform_indices = @transform_0, window_bounds = array<i64: 1, 16, 2, 128>}, {transform_indices = @transform_1, window_bounds = array<i64: 1, 22, 2, 128>}]} {
    %0 = arith.index_cast %arg0 : i32 to index
    %c0 = arith.constant 0 : index
    %1 = memref.load %arg2[%0, %c0] : memref<2x16xf32, #tpu.memory_space<smem>>
    %2 = arith.index_cast %arg0 : i32 to index
    %c1 = arith.constant 1 : index
    %3 = memref.load %arg2[%2, %c1] : memref<2x16xf32, #tpu.memory_space<smem>>
    %4 = arith.index_cast %arg0 : i32 to index
    %c2 = arith.constant 2 : index
    %5 = memref.load %arg2[%4, %c2] : memref<2x16xf32, #tpu.memory_space<smem>>
    %6 = arith.index_cast %arg0 : i32 to index
    %c3 = arith.constant 3 : index
    %7 = memref.load %arg2[%6, %c3] : memref<2x16xf32, #tpu.memory_space<smem>>
    %8 = arith.index_cast %arg0 : i32 to index
    %c4 = arith.constant 4 : index
    %9 = memref.load %arg2[%8, %c4] : memref<2x16xf32, #tpu.memory_space<smem>>
    %10 = arith.index_cast %arg0 : i32 to index
    %c5 = arith.constant 5 : index
    %11 = memref.load %arg2[%10, %c5] : memref<2x16xf32, #tpu.memory_space<smem>>
    %12 = arith.index_cast %arg0 : i32 to index
    %c6 = arith.constant 6 : index
    %13 = memref.load %arg2[%12, %c6] : memref<2x16xf32, #tpu.memory_space<smem>>
    %14 = arith.index_cast %arg0 : i32 to index
    %c7 = arith.constant 7 : index
    %15 = memref.load %arg2[%14, %c7] : memref<2x16xf32, #tpu.memory_space<smem>>
    %16 = arith.index_cast %arg0 : i32 to index
    %c8 = arith.constant 8 : index
    %17 = memref.load %arg2[%16, %c8] : memref<2x16xf32, #tpu.memory_space<smem>>
    %18 = arith.index_cast %arg0 : i32 to index
    %c9 = arith.constant 9 : index
    %19 = memref.load %arg2[%18, %c9] : memref<2x16xf32, #tpu.memory_space<smem>>
    %20 = arith.index_cast %arg0 : i32 to index
    %c10 = arith.constant 10 : index
    %21 = memref.load %arg2[%20, %c10] : memref<2x16xf32, #tpu.memory_space<smem>>
    %22 = arith.index_cast %arg0 : i32 to index
    %c11 = arith.constant 11 : index
    %23 = memref.load %arg2[%22, %c11] : memref<2x16xf32, #tpu.memory_space<smem>>
    %24 = arith.index_cast %arg0 : i32 to index
    %c0_0 = arith.constant 0 : index
    %25 = memref.load %arg3[%24, %c0_0] : memref<2x9xf32, #tpu.memory_space<smem>>
    %26 = arith.index_cast %arg0 : i32 to index
    %c1_1 = arith.constant 1 : index
    %27 = memref.load %arg3[%26, %c1_1] : memref<2x9xf32, #tpu.memory_space<smem>>
    %28 = arith.index_cast %arg0 : i32 to index
    %c2_2 = arith.constant 2 : index
    %29 = memref.load %arg3[%28, %c2_2] : memref<2x9xf32, #tpu.memory_space<smem>>
    %30 = arith.index_cast %arg0 : i32 to index
    %c3_3 = arith.constant 3 : index
    %31 = memref.load %arg3[%30, %c3_3] : memref<2x9xf32, #tpu.memory_space<smem>>
    %32 = arith.index_cast %arg0 : i32 to index
    %c4_4 = arith.constant 4 : index
    %33 = memref.load %arg3[%32, %c4_4] : memref<2x9xf32, #tpu.memory_space<smem>>
    %34 = arith.index_cast %arg0 : i32 to index
    %c5_5 = arith.constant 5 : index
    %35 = memref.load %arg3[%34, %c5_5] : memref<2x9xf32, #tpu.memory_space<smem>>
    %36 = arith.index_cast %arg0 : i32 to index
    %c6_6 = arith.constant 6 : index
    %37 = memref.load %arg3[%36, %c6_6] : memref<2x9xf32, #tpu.memory_space<smem>>
    %38 = arith.index_cast %arg0 : i32 to index
    %c7_7 = arith.constant 7 : index
    %39 = memref.load %arg3[%38, %c7_7] : memref<2x9xf32, #tpu.memory_space<smem>>
    %40 = arith.index_cast %arg0 : i32 to index
    %c8_8 = arith.constant 8 : index
    %41 = memref.load %arg3[%40, %c8_8] : memref<2x9xf32, #tpu.memory_space<smem>>
    %c0_9 = arith.constant 0 : index
    %c0_10 = arith.constant 0 : index
    %c0_11 = arith.constant 0 : index
    %c0_12 = arith.constant 0 : index
    %42 = vector.load %arg4[%c0_9, %c0_10, %c0_11, %c0_12] : memref<1x16x2x128xf32, #tpu.memory_space<vmem>>, vector<1x3x2x128xf32>
    %43 = vector.shape_cast %42 : vector<1x3x2x128xf32> to vector<3x2x128xf32>
    %cst = arith.constant 4.000000e+00 : f32
    %44 = vector.broadcast %cst : f32 to vector<3x2x128xf32>
    %45 = arith.subf %43, %44 : vector<3x2x128xf32>
    %cst_13 = arith.constant 0.000000e+00 : f32
    %46 = vector.broadcast %cst_13 : f32 to vector<3x2x128xf32>
    %47 = arith.maximumf %45, %46 : vector<3x2x128xf32>
    %48 = vector.broadcast %cst_13 : f32 to vector<3x2x128xf32>
    %49 = arith.subf %45, %48 : vector<3x2x128xf32>
    %50 = arith.cmpf one, %49, %49 : vector<3x2x128xf32>
    %51 = vector.broadcast %cst_13 : f32 to vector<3x2x128xf32>
    %52 = arith.addf %45, %51 : vector<3x2x128xf32>
    %53 = math.absf %49 : vector<3x2x128xf32>
    %cst_14 = arith.constant 0.000000e+00 : f32
    %54 = vector.broadcast %cst_14 : f32 to vector<3x2x128xf32>
    %55 = arith.subf %54, %53 : vector<3x2x128xf32>
    %56 = math.exp %55 : vector<3x2x128xf32>
    %57 = math.log1p %56 : vector<3x2x128xf32>
    %58 = arith.addf %47, %57 : vector<3x2x128xf32>
    %59 = arith.select %50, %52, %58 : vector<3x2x128xi1>, vector<3x2x128xf32>
    %cst_15 = arith.constant 1.000000e-03 : f32
    %cst_16 = arith.constant 3.000000e-01 : f32
    %60 = vector.broadcast %cst_15 : f32 to vector<3x2x128xf32>
    %61 = arith.maximumf %60, %59 : vector<3x2x128xf32>
    %62 = vector.broadcast %cst_16 : f32 to vector<3x2x128xf32>
    %63 = arith.minimumf %62, %61 : vector<3x2x128xf32>
    %c0_17 = arith.constant 0 : index
    %c12 = arith.constant 12 : index
    %c0_18 = arith.constant 0 : index
    %c0_19 = arith.constant 0 : index
    %64 = vector.load %arg5[%c0_17, %c12, %c0_18, %c0_19] : memref<1x22x2x128xf32, #tpu.memory_space<vmem>>, vector<1x3x2x128xf32>
    %65 = vector.shape_cast %64 : vector<1x3x2x128xf32> to vector<3x2x128xf32>
    %66 = vector.shape_cast %63 : vector<3x2x128xf32> to vector<1x3x2x128xf32>
    tpu.vector_store %arg5[%c0_17, %c12, %c0_18, %c0_19], %66 {strides = array<i32>} : memref<1x22x2x128xf32, #tpu.memory_space<vmem>>, vector<1x3x2x128xf32>,
    %c0_20 = arith.constant 0 : index
    %c3_21 = arith.constant 3 : index
    %c0_22 = arith.constant 0 : index
    %c0_23 = arith.constant 0 : index
    %67 = vector.load %arg4[%c0_20, %c3_21, %c0_22, %c0_23] : memref<1x16x2x128xf32, #tpu.memory_space<vmem>>, vector<1x1x2x128xf32>
    %68 = vector.shape_cast %67 : vector<1x1x2x128xf32> to vector<2x128xf32>
    %c0_24 = arith.constant 0 : index
    %c4_25 = arith.constant 4 : index
    %c0_26 = arith.constant 0 : index
    %c0_27 = arith.constant 0 : index
    %69 = vector.load %arg4[%c0_24, %c4_25, %c0_26, %c0_27] : memref<1x16x2x128xf32, #tpu.memory_space<vmem>>, vector<1x1x2x128xf32>
    %70 = vector.shape_cast %69 : vector<1x1x2x128xf32> to vector<2x128xf32>
    %c0_28 = arith.constant 0 : index
    %c5_29 = arith.constant 5 : index
    %c0_30 = arith.constant 0 : index
    %c0_31 = arith.constant 0 : index
    %71 = vector.load %arg4[%c0_28, %c5_29, %c0_30, %c0_31] : memref<1x16x2x128xf32, #tpu.memory_space<vmem>>, vector<1x1x2x128xf32>
    %72 = vector.shape_cast %71 : vector<1x1x2x128xf32> to vector<2x128xf32>
    %c0_32 = arith.constant 0 : index
    %c6_33 = arith.constant 6 : index
    %c0_34 = arith.constant 0 : index
    %c0_35 = arith.constant 0 : index
    %73 = vector.load %arg4[%c0_32, %c6_33, %c0_34, %c0_35] : memref<1x16x2x128xf32, #tpu.memory_space<vmem>>, vector<1x1x2x128xf32>
    %74 = vector.shape_cast %73 : vector<1x1x2x128xf32> to vector<2x128xf32>
    %75 = arith.mulf %68, %68 : vector<2x128xf32>
    %76 = arith.mulf %70, %70 : vector<2x128xf32>
    %77 = arith.addf %75, %76 : vector<2x128xf32>
    %78 = arith.mulf %72, %72 : vector<2x128xf32>
    %79 = arith.addf %77, %78 : vector<2x128xf32>
    %80 = arith.mulf %74, %74 : vector<2x128xf32>
    %81 = arith.addf %79, %80 : vector<2x128xf32>
    %82 = math.sqrt %81 : vector<2x128xf32>
    %cst_36 = arith.constant 9.99999993E-9 : f32
    %83 = vector.broadcast %cst_36 : f32 to vector<2x128xf32>
    %84 = arith.addf %82, %83 : vector<2x128xf32>
    %85 = tpu.reciprocal %84 : vector<2x128xf32> -> vector<2x128xf32>
    %86 = arith.mulf %68, %85 : vector<2x128xf32>
    %87 = arith.mulf %70, %85 : vector<2x128xf32>
    %88 = arith.mulf %72, %85 : vector<2x128xf32>
    %89 = arith.mulf %74, %85 : vector<2x128xf32>
    %c0_37 = arith.constant 0 : index
    %c15 = arith.constant 15 : index
    %c0_38 = arith.constant 0 : index
    %c0_39 = arith.constant 0 : index
    %90 = vector.load %arg5[%c0_37, %c15, %c0_38, %c0_39] : memref<1x22x2x128xf32, #tpu.memory_space<vmem>>, vector<1x1x2x128xf32>
    %91 = vector.shape_cast %90 : vector<1x1x2x128xf32> to vector<2x128xf32>
    %92 = vector.shape_cast %86 : vector<2x128xf32> to vector<1x1x2x128xf32>
    tpu.vector_store %arg5[%c0_37, %c15, %c0_38, %c0_39], %92 {strides = array<i32>} : memref<1x22x2x128xf32, #tpu.memory_space<vmem>>, vector<1x1x2x128xf32>,
    %c0_40 = arith.constant 0 : index
    %c16 = arith.constant 16 : index
    %c0_41 = arith.constant 0 : index
    %c0_42 = arith.constant 0 : index
    %93 = vector.load %arg5[%c0_40, %c16, %c0_41, %c0_42] : memref<1x22x2x128xf32, #tpu.memory_space<vmem>>, vector<1x1x2x128xf32>
    %94 = vector.shape_cast %93 : vector<1x1x2x128xf32> to vector<2x128xf32>
    %95 = vector.shape_cast %87 : vector<2x128xf32> to vector<1x1x2x128xf32>
    tpu.vector_store %arg5[%c0_40, %c16, %c0_41, %c0_42], %95 {strides = array<i32>} : memref<1x22x2x128xf32, #tpu.memory_space<vmem>>, vector<1x1x2x128xf32>,
    %c0_43 = arith.constant 0 : index
    %c17 = arith.constant 17 : index
    %c0_44 = arith.constant 0 : index
    %c0_45 = arith.constant 0 : index
    %96 = vector.load %arg5[%c0_43, %c17, %c0_44, %c0_45] : memref<1x22x2x128xf32, #tpu.memory_space<vmem>>, vector<1x1x2x128xf32>
    %97 = vector.shape_cast %96 : vector<1x1x2x128xf32> to vector<2x128xf32>
    %98 = vector.shape_cast %88 : vector<2x128xf32> to vector<1x1x2x128xf32>
    tpu.vector_store %arg5[%c0_43, %c17, %c0_44, %c0_45], %98 {strides = array<i32>} : memref<1x22x2x128xf32, #tpu.memory_space<vmem>>, vector<1x1x2x128xf32>,
    %c0_46 = arith.constant 0 : index
    %c18 = arith.constant 18 : index
    %c0_47 = arith.constant 0 : index
    %c0_48 = arith.constant 0 : index
    %99 = vector.load %arg5[%c0_46, %c18, %c0_47, %c0_48] : memref<1x22x2x128xf32, #tpu.memory_space<vmem>>, vector<1x1x2x128xf32>
    %100 = vector.shape_cast %99 : vector<1x1x2x128xf32> to vector<2x128xf32>
    %101 = vector.shape_cast %89 : vector<2x128xf32> to vector<1x1x2x128xf32>
    tpu.vector_store %arg5[%c0_46, %c18, %c0_47, %c0_48], %101 {strides = array<i32>} : memref<1x22x2x128xf32, #tpu.memory_space<vmem>>, vector<1x1x2x128xf32>,
    %102 = arith.mulf %85, %85 : vector<2x128xf32>
    %103 = arith.mulf %81, %102 : vector<2x128xf32>
    %cst_49 = arith.constant 9.99999993E-9 : f32
    %104 = vector.broadcast %cst_49 : f32 to vector<2x128xf32>
    %105 = arith.addf %103, %104 : vector<2x128xf32>
    %106 = tpu.reciprocal %105 : vector<2x128xf32> -> vector<2x128xf32>
    %cst_50 = arith.constant 2.000000e+00 : f32
    %107 = vector.broadcast %cst_50 : f32 to vector<2x128xf32>
    %108 = arith.mulf %107, %106 : vector<2x128xf32>
    %109 = arith.mulf %87, %87 : vector<2x128xf32>
    %110 = arith.mulf %88, %88 : vector<2x128xf32>
    %111 = arith.addf %109, %110 : vector<2x128xf32>
    %112 = arith.mulf %108, %111 : vector<2x128xf32>
    %cst_51 = arith.constant 1.000000e+00 : f32
    %113 = vector.broadcast %cst_51 : f32 to vector<2x128xf32>
    %114 = arith.subf %113, %112 : vector<2x128xf32>
    %115 = arith.mulf %86, %87 : vector<2x128xf32>
    %116 = arith.mulf %88, %89 : vector<2x128xf32>
    %117 = arith.subf %115, %116 : vector<2x128xf32>
    %118 = arith.mulf %108, %117 : vector<2x128xf32>
    %119 = arith.mulf %86, %88 : vector<2x128xf32>
    %120 = arith.mulf %87, %89 : vector<2x128xf32>
    %121 = arith.addf %119, %120 : vector<2x128xf32>
    %122 = arith.mulf %108, %121 : vector<2x128xf32>
    %123 = arith.mulf %86, %87 : vector<2x128xf32>
    %124 = arith.mulf %88, %89 : vector<2x128xf32>
    %125 = arith.addf %123, %124 : vector<2x128xf32>
    %126 = arith.mulf %108, %125 : vector<2x128xf32>
    %127 = arith.mulf %86, %86 : vector<2x128xf32>
    %128 = arith.mulf %88, %88 : vector<2x128xf32>
    %129 = arith.addf %127, %128 : vector<2x128xf32>
    %130 = arith.mulf %108, %129 : vector<2x128xf32>
    %cst_52 = arith.constant 1.000000e+00 : f32
    %131 = vector.broadcast %cst_52 : f32 to vector<2x128xf32>
    %132 = arith.subf %131, %130 : vector<2x128xf32>
    %133 = arith.mulf %87, %88 : vector<2x128xf32>
    %134 = arith.mulf %86, %89 : vector<2x128xf32>
    %135 = arith.subf %133, %134 : vector<2x128xf32>
    %136 = arith.mulf %108, %135 : vector<2x128xf32>
    %137 = arith.mulf %86, %88 : vector<2x128xf32>
    %138 = arith.mulf %87, %89 : vector<2x128xf32>
    %139 = arith.subf %137, %138 : vector<2x128xf32>
    %140 = arith.mulf %108, %139 : vector<2x128xf32>
    %141 = arith.mulf %87, %88 : vector<2x128xf32>
    %142 = arith.mulf %86, %89 : vector<2x128xf32>
    %143 = arith.addf %141, %142 : vector<2x128xf32>
    %144 = arith.mulf %108, %143 : vector<2x128xf32>
    %145 = arith.mulf %86, %86 : vector<2x128xf32>
    %146 = arith.mulf %87, %87 : vector<2x128xf32>
    %147 = arith.addf %145, %146 : vector<2x128xf32>
    %148 = arith.mulf %108, %147 : vector<2x128xf32>
    %cst_53 = arith.constant 1.000000e+00 : f32
    %149 = vector.broadcast %cst_53 : f32 to vector<2x128xf32>
    %150 = arith.subf %149, %148 : vector<2x128xf32>
    %151 = vector.extract_strided_slice %63 {offsets = [0, 0, 0], sizes = [1, 2, 128], strides = [1, 1, 1]} : vector<3x2x128xf32> to vector<1x2x128xf32>
    %152 = vector.shape_cast %151 : vector<1x2x128xf32> to vector<2x128xf32>
    %153 = vector.extract_strided_slice %63 {offsets = [0, 0, 0], sizes = [1, 2, 128], strides = [1, 1, 1]} : vector<3x2x128xf32> to vector<1x2x128xf32>
    %154 = vector.shape_cast %153 : vector<1x2x128xf32> to vector<2x128xf32>
    %155 = arith.mulf %152, %154 : vector<2x128xf32>
    %156 = vector.extract_strided_slice %63 {offsets = [1, 0, 0], sizes = [1, 2, 128], strides = [1, 1, 1]} : vector<3x2x128xf32> to vector<1x2x128xf32>
    %157 = vector.shape_cast %156 : vector<1x2x128xf32> to vector<2x128xf32>
    %158 = vector.extract_strided_slice %63 {offsets = [1, 0, 0], sizes = [1, 2, 128], strides = [1, 1, 1]} : vector<3x2x128xf32> to vector<1x2x128xf32>
    %159 = vector.shape_cast %158 : vector<1x2x128xf32> to vector<2x128xf32>
    %160 = arith.mulf %157, %159 : vector<2x128xf32>
    %161 = vector.extract_strided_slice %63 {offsets = [2, 0, 0], sizes = [1, 2, 128], strides = [1, 1, 1]} : vector<3x2x128xf32> to vector<1x2x128xf32>
    %162 = vector.shape_cast %161 : vector<1x2x128xf32> to vector<2x128xf32>
    %163 = vector.extract_strided_slice %63 {offsets = [2, 0, 0], sizes = [1, 2, 128], strides = [1, 1, 1]} : vector<3x2x128xf32> to vector<1x2x128xf32>
    %164 = vector.shape_cast %163 : vector<1x2x128xf32> to vector<2x128xf32>
    %165 = arith.mulf %162, %164 : vector<2x128xf32>
    %166 = arith.mulf %114, %155 : vector<2x128xf32>
    %167 = arith.mulf %118, %160 : vector<2x128xf32>
    %168 = arith.mulf %122, %165 : vector<2x128xf32>
    %169 = arith.mulf %126, %155 : vector<2x128xf32>
    %170 = arith.mulf %132, %160 : vector<2x128xf32>
    %171 = arith.mulf %136, %165 : vector<2x128xf32>
    %172 = arith.mulf %140, %155 : vector<2x128xf32>
    %173 = arith.mulf %144, %160 : vector<2x128xf32>
    %174 = arith.mulf %150, %165 : vector<2x128xf32>
    %175 = arith.mulf %166, %114 : vector<2x128xf32>
    %176 = arith.mulf %167, %118 : vector<2x128xf32>
    %177 = arith.addf %175, %176 : vector<2x128xf32>
    %178 = arith.mulf %168, %122 : vector<2x128xf32>
    %179 = arith.addf %177, %178 : vector<2x128xf32>
    %180 = arith.mulf %166, %126 : vector<2x128xf32>
    %181 = arith.mulf %167, %132 : vector<2x128xf32>
    %182 = arith.addf %180, %181 : vector<2x128xf32>
    %183 = arith.mulf %168, %136 : vector<2x128xf32>
    %184 = arith.addf %182, %183 : vector<2x128xf32>
    %185 = arith.mulf %166, %140 : vector<2x128xf32>
    %186 = arith.mulf %167, %144 : vector<2x128xf32>
    %187 = arith.addf %185, %186 : vector<2x128xf32>
    %188 = arith.mulf %168, %150 : vector<2x128xf32>
    %189 = arith.addf %187, %188 : vector<2x128xf32>
    %190 = arith.mulf %169, %126 : vector<2x128xf32>
    %191 = arith.mulf %170, %132 : vector<2x128xf32>
    %192 = arith.addf %190, %191 : vector<2x128xf32>
    %193 = arith.mulf %171, %136 : vector<2x128xf32>
    %194 = arith.addf %192, %193 : vector<2x128xf32>
    %195 = arith.mulf %169, %140 : vector<2x128xf32>
    %196 = arith.mulf %170, %144 : vector<2x128xf32>
    %197 = arith.addf %195, %196 : vector<2x128xf32>
    %198 = arith.mulf %171, %150 : vector<2x128xf32>
    %199 = arith.addf %197, %198 : vector<2x128xf32>
    %200 = arith.mulf %172, %140 : vector<2x128xf32>
    %201 = arith.mulf %173, %144 : vector<2x128xf32>
    %202 = arith.addf %200, %201 : vector<2x128xf32>
    %203 = arith.mulf %174, %150 : vector<2x128xf32>
    %204 = arith.addf %202, %203 : vector<2x128xf32>
    %205 = vector.broadcast %1 : f32 to vector<2x128xf32>
    %206 = arith.mulf %205, %179 : vector<2x128xf32>
    %207 = vector.broadcast %3 : f32 to vector<2x128xf32>
    %208 = arith.mulf %207, %184 : vector<2x128xf32>
    %209 = arith.addf %206, %208 : vector<2x128xf32>
    %210 = vector.broadcast %5 : f32 to vector<2x128xf32>
    %211 = arith.mulf %210, %189 : vector<2x128xf32>
    %212 = arith.addf %209, %211 : vector<2x128xf32>
    %213 = vector.broadcast %1 : f32 to vector<2x128xf32>
    %214 = arith.mulf %213, %184 : vector<2x128xf32>
    %215 = vector.broadcast %3 : f32 to vector<2x128xf32>
    %216 = arith.mulf %215, %194 : vector<2x128xf32>
    %217 = arith.addf %214, %216 : vector<2x128xf32>
    %218 = vector.broadcast %5 : f32 to vector<2x128xf32>
    %219 = arith.mulf %218, %199 : vector<2x128xf32>
    %220 = arith.addf %217, %219 : vector<2x128xf32>
    %221 = vector.broadcast %1 : f32 to vector<2x128xf32>
    %222 = arith.mulf %221, %189 : vector<2x128xf32>
    %223 = vector.broadcast %3 : f32 to vector<2x128xf32>
    %224 = arith.mulf %223, %199 : vector<2x128xf32>
    %225 = arith.addf %222, %224 : vector<2x128xf32>
    %226 = vector.broadcast %5 : f32 to vector<2x128xf32>
    %227 = arith.mulf %226, %204 : vector<2x128xf32>
    %228 = arith.addf %225, %227 : vector<2x128xf32>
    %229 = vector.broadcast %9 : f32 to vector<2x128xf32>
    %230 = arith.mulf %229, %179 : vector<2x128xf32>
    %231 = vector.broadcast %11 : f32 to vector<2x128xf32>
    %232 = arith.mulf %231, %184 : vector<2x128xf32>
    %233 = arith.addf %230, %232 : vector<2x128xf32>
    %234 = vector.broadcast %13 : f32 to vector<2x128xf32>
    %235 = arith.mulf %234, %189 : vector<2x128xf32>
    %236 = arith.addf %233, %235 : vector<2x128xf32>
    %237 = vector.broadcast %9 : f32 to vector<2x128xf32>
    %238 = arith.mulf %237, %184 : vector<2x128xf32>
    %239 = vector.broadcast %11 : f32 to vector<2x128xf32>
    %240 = arith.mulf %239, %194 : vector<2x128xf32>
    %241 = arith.addf %238, %240 : vector<2x128xf32>
    %242 = vector.broadcast %13 : f32 to vector<2x128xf32>
    %243 = arith.mulf %242, %199 : vector<2x128xf32>
    %244 = arith.addf %241, %243 : vector<2x128xf32>
    %245 = vector.broadcast %9 : f32 to vector<2x128xf32>
    %246 = arith.mulf %245, %189 : vector<2x128xf32>
    %247 = vector.broadcast %11 : f32 to vector<2x128xf32>
    %248 = arith.mulf %247, %199 : vector<2x128xf32>
    %249 = arith.addf %246, %248 : vector<2x128xf32>
    %250 = vector.broadcast %13 : f32 to vector<2x128xf32>
    %251 = arith.mulf %250, %204 : vector<2x128xf32>
    %252 = arith.addf %249, %251 : vector<2x128xf32>
    %253 = vector.broadcast %17 : f32 to vector<2x128xf32>
    %254 = arith.mulf %253, %179 : vector<2x128xf32>
    %255 = vector.broadcast %19 : f32 to vector<2x128xf32>
    %256 = arith.mulf %255, %184 : vector<2x128xf32>
    %257 = arith.addf %254, %256 : vector<2x128xf32>
    %258 = vector.broadcast %21 : f32 to vector<2x128xf32>
    %259 = arith.mulf %258, %189 : vector<2x128xf32>
    %260 = arith.addf %257, %259 : vector<2x128xf32>
    %261 = vector.broadcast %17 : f32 to vector<2x128xf32>
    %262 = arith.mulf %261, %184 : vector<2x128xf32>
    %263 = vector.broadcast %19 : f32 to vector<2x128xf32>
    %264 = arith.mulf %263, %194 : vector<2x128xf32>
    %265 = arith.addf %262, %264 : vector<2x128xf32>
    %266 = vector.broadcast %21 : f32 to vector<2x128xf32>
    %267 = arith.mulf %266, %199 : vector<2x128xf32>
    %268 = arith.addf %265, %267 : vector<2x128xf32>
    %269 = vector.broadcast %17 : f32 to vector<2x128xf32>
    %270 = arith.mulf %269, %189 : vector<2x128xf32>
    %271 = vector.broadcast %19 : f32 to vector<2x128xf32>
    %272 = arith.mulf %271, %199 : vector<2x128xf32>
    %273 = arith.addf %270, %272 : vector<2x128xf32>
    %274 = vector.broadcast %21 : f32 to vector<2x128xf32>
    %275 = arith.mulf %274, %204 : vector<2x128xf32>
    %276 = arith.addf %273, %275 : vector<2x128xf32>
    %277 = vector.broadcast %1 : f32 to vector<2x128xf32>
    %278 = arith.mulf %212, %277 : vector<2x128xf32>
    %279 = vector.broadcast %3 : f32 to vector<2x128xf32>
    %280 = arith.mulf %220, %279 : vector<2x128xf32>
    %281 = arith.addf %278, %280 : vector<2x128xf32>
    %282 = vector.broadcast %5 : f32 to vector<2x128xf32>
    %283 = arith.mulf %228, %282 : vector<2x128xf32>
    %284 = arith.addf %281, %283 : vector<2x128xf32>
    %285 = vector.broadcast %9 : f32 to vector<2x128xf32>
    %286 = arith.mulf %212, %285 : vector<2x128xf32>
    %287 = vector.broadcast %11 : f32 to vector<2x128xf32>
    %288 = arith.mulf %220, %287 : vector<2x128xf32>
    %289 = arith.addf %286, %288 : vector<2x128xf32>
    %290 = vector.broadcast %13 : f32 to vector<2x128xf32>
    %291 = arith.mulf %228, %290 : vector<2x128xf32>
    %292 = arith.addf %289, %291 : vector<2x128xf32>
    %293 = vector.broadcast %17 : f32 to vector<2x128xf32>
    %294 = arith.mulf %212, %293 : vector<2x128xf32>
    %295 = vector.broadcast %19 : f32 to vector<2x128xf32>
    %296 = arith.mulf %220, %295 : vector<2x128xf32>
    %297 = arith.addf %294, %296 : vector<2x128xf32>
    %298 = vector.broadcast %21 : f32 to vector<2x128xf32>
    %299 = arith.mulf %228, %298 : vector<2x128xf32>
    %300 = arith.addf %297, %299 : vector<2x128xf32>
    %301 = vector.broadcast %9 : f32 to vector<2x128xf32>
    %302 = arith.mulf %236, %301 : vector<2x128xf32>
    %303 = vector.broadcast %11 : f32 to vector<2x128xf32>
    %304 = arith.mulf %244, %303 : vector<2x128xf32>
    %305 = arith.addf %302, %304 : vector<2x128xf32>
    %306 = vector.broadcast %13 : f32 to vector<2x128xf32>
    %307 = arith.mulf %252, %306 : vector<2x128xf32>
    %308 = arith.addf %305, %307 : vector<2x128xf32>
    %309 = vector.broadcast %17 : f32 to vector<2x128xf32>
    %310 = arith.mulf %236, %309 : vector<2x128xf32>
    %311 = vector.broadcast %19 : f32 to vector<2x128xf32>
    %312 = arith.mulf %244, %311 : vector<2x128xf32>
    %313 = arith.addf %310, %312 : vector<2x128xf32>
    %314 = vector.broadcast %21 : f32 to vector<2x128xf32>
    %315 = arith.mulf %252, %314 : vector<2x128xf32>
    %316 = arith.addf %313, %315 : vector<2x128xf32>
    %317 = vector.broadcast %17 : f32 to vector<2x128xf32>
    %318 = arith.mulf %260, %317 : vector<2x128xf32>
    %319 = vector.broadcast %19 : f32 to vector<2x128xf32>
    %320 = arith.mulf %268, %319 : vector<2x128xf32>
    %321 = arith.addf %318, %320 : vector<2x128xf32>
    %322 = vector.broadcast %21 : f32 to vector<2x128xf32>
    %323 = arith.mulf %276, %322 : vector<2x128xf32>
    %324 = arith.addf %321, %323 : vector<2x128xf32>
    %c0_54 = arith.constant 0 : index
    %c3_55 = arith.constant 3 : index
    %c0_56 = arith.constant 0 : index
    %c0_57 = arith.constant 0 : index
    %325 = vector.load %arg5[%c0_54, %c3_55, %c0_56, %c0_57] : memref<1x22x2x128xf32, #tpu.memory_space<vmem>>, vector<1x1x2x128xf32>
    %326 = vector.shape_cast %325 : vector<1x1x2x128xf32> to vector<2x128xf32>
    %327 = vector.shape_cast %284 : vector<2x128xf32> to vector<1x1x2x128xf32>
    tpu.vector_store %arg5[%c0_54, %c3_55, %c0_56, %c0_57], %327 {strides = array<i32>} : memref<1x22x2x128xf32, #tpu.memory_space<vmem>>, vector<1x1x2x128xf32>,
    %c0_58 = arith.constant 0 : index
    %c4_59 = arith.constant 4 : index
    %c0_60 = arith.constant 0 : index
    %c0_61 = arith.constant 0 : index
    %328 = vector.load %arg5[%c0_58, %c4_59, %c0_60, %c0_61] : memref<1x22x2x128xf32, #tpu.memory_space<vmem>>, vector<1x1x2x128xf32>
    %329 = vector.shape_cast %328 : vector<1x1x2x128xf32> to vector<2x128xf32>
    %330 = vector.shape_cast %292 : vector<2x128xf32> to vector<1x1x2x128xf32>
    tpu.vector_store %arg5[%c0_58, %c4_59, %c0_60, %c0_61], %330 {strides = array<i32>} : memref<1x22x2x128xf32, #tpu.memory_space<vmem>>, vector<1x1x2x128xf32>,
    %c0_62 = arith.constant 0 : index
    %c5_63 = arith.constant 5 : index
    %c0_64 = arith.constant 0 : index
    %c0_65 = arith.constant 0 : index
    %331 = vector.load %arg5[%c0_62, %c5_63, %c0_64, %c0_65] : memref<1x22x2x128xf32, #tpu.memory_space<vmem>>, vector<1x1x2x128xf32>
    %332 = vector.shape_cast %331 : vector<1x1x2x128xf32> to vector<2x128xf32>
    %333 = vector.shape_cast %300 : vector<2x128xf32> to vector<1x1x2x128xf32>
    tpu.vector_store %arg5[%c0_62, %c5_63, %c0_64, %c0_65], %333 {strides = array<i32>} : memref<1x22x2x128xf32, #tpu.memory_space<vmem>>, vector<1x1x2x128xf32>,
    %c0_66 = arith.constant 0 : index
    %c6_67 = arith.constant 6 : index
    %c0_68 = arith.constant 0 : index
    %c0_69 = arith.constant 0 : index
    %334 = vector.load %arg5[%c0_66, %c6_67, %c0_68, %c0_69] : memref<1x22x2x128xf32, #tpu.memory_space<vmem>>, vector<1x1x2x128xf32>
    %335 = vector.shape_cast %334 : vector<1x1x2x128xf32> to vector<2x128xf32>
    %336 = vector.shape_cast %292 : vector<2x128xf32> to vector<1x1x2x128xf32>
    tpu.vector_store %arg5[%c0_66, %c6_67, %c0_68, %c0_69], %336 {strides = array<i32>} : memref<1x22x2x128xf32, #tpu.memory_space<vmem>>, vector<1x1x2x128xf32>,
    %c0_70 = arith.constant 0 : index
    %c7_71 = arith.constant 7 : index
    %c0_72 = arith.constant 0 : index
    %c0_73 = arith.constant 0 : index
    %337 = vector.load %arg5[%c0_70, %c7_71, %c0_72, %c0_73] : memref<1x22x2x128xf32, #tpu.memory_space<vmem>>, vector<1x1x2x128xf32>
    %338 = vector.shape_cast %337 : vector<1x1x2x128xf32> to vector<2x128xf32>
    %339 = vector.shape_cast %308 : vector<2x128xf32> to vector<1x1x2x128xf32>
    tpu.vector_store %arg5[%c0_70, %c7_71, %c0_72, %c0_73], %339 {strides = array<i32>} : memref<1x22x2x128xf32, #tpu.memory_space<vmem>>, vector<1x1x2x128xf32>,
    %c0_74 = arith.constant 0 : index
    %c8_75 = arith.constant 8 : index
    %c0_76 = arith.constant 0 : index
    %c0_77 = arith.constant 0 : index
    %340 = vector.load %arg5[%c0_74, %c8_75, %c0_76, %c0_77] : memref<1x22x2x128xf32, #tpu.memory_space<vmem>>, vector<1x1x2x128xf32>
    %341 = vector.shape_cast %340 : vector<1x1x2x128xf32> to vector<2x128xf32>
    %342 = vector.shape_cast %316 : vector<2x128xf32> to vector<1x1x2x128xf32>
    tpu.vector_store %arg5[%c0_74, %c8_75, %c0_76, %c0_77], %342 {strides = array<i32>} : memref<1x22x2x128xf32, #tpu.memory_space<vmem>>, vector<1x1x2x128xf32>,
    %c0_78 = arith.constant 0 : index
    %c9_79 = arith.constant 9 : index
    %c0_80 = arith.constant 0 : index
    %c0_81 = arith.constant 0 : index
    %343 = vector.load %arg5[%c0_78, %c9_79, %c0_80, %c0_81] : memref<1x22x2x128xf32, #tpu.memory_space<vmem>>, vector<1x1x2x128xf32>
    %344 = vector.shape_cast %343 : vector<1x1x2x128xf32> to vector<2x128xf32>
    %345 = vector.shape_cast %300 : vector<2x128xf32> to vector<1x1x2x128xf32>
    tpu.vector_store %arg5[%c0_78, %c9_79, %c0_80, %c0_81], %345 {strides = array<i32>} : memref<1x22x2x128xf32, #tpu.memory_space<vmem>>, vector<1x1x2x128xf32>,
    %c0_82 = arith.constant 0 : index
    %c10_83 = arith.constant 10 : index
    %c0_84 = arith.constant 0 : index
    %c0_85 = arith.constant 0 : index
    %346 = vector.load %arg5[%c0_82, %c10_83, %c0_84, %c0_85] : memref<1x22x2x128xf32, #tpu.memory_space<vmem>>, vector<1x1x2x128xf32>
    %347 = vector.shape_cast %346 : vector<1x1x2x128xf32> to vector<2x128xf32>
    %348 = vector.shape_cast %316 : vector<2x128xf32> to vector<1x1x2x128xf32>
    tpu.vector_store %arg5[%c0_82, %c10_83, %c0_84, %c0_85], %348 {strides = array<i32>} : memref<1x22x2x128xf32, #tpu.memory_space<vmem>>, vector<1x1x2x128xf32>,
    %c0_86 = arith.constant 0 : index
    %c11_87 = arith.constant 11 : index
    %c0_88 = arith.constant 0 : index
    %c0_89 = arith.constant 0 : index
    %349 = vector.load %arg5[%c0_86, %c11_87, %c0_88, %c0_89] : memref<1x22x2x128xf32, #tpu.memory_space<vmem>>, vector<1x1x2x128xf32>
    %350 = vector.shape_cast %349 : vector<1x1x2x128xf32> to vector<2x128xf32>
    %351 = vector.shape_cast %324 : vector<2x128xf32> to vector<1x1x2x128xf32>
    tpu.vector_store %arg5[%c0_86, %c11_87, %c0_88, %c0_89], %351 {strides = array<i32>} : memref<1x22x2x128xf32, #tpu.memory_space<vmem>>, vector<1x1x2x128xf32>,
    %c0_90 = arith.constant 0 : index
    %c10_91 = arith.constant 10 : index
    %c0_92 = arith.constant 0 : index
    %c0_93 = arith.constant 0 : index
    %352 = vector.load %arg4[%c0_90, %c10_91, %c0_92, %c0_93] : memref<1x16x2x128xf32, #tpu.memory_space<vmem>>, vector<1x1x2x128xf32>
    %353 = vector.shape_cast %352 : vector<1x1x2x128xf32> to vector<2x128xf32>
    %c0_94 = arith.constant 0 : index
    %c11_95 = arith.constant 11 : index
    %c0_96 = arith.constant 0 : index
    %c0_97 = arith.constant 0 : index
    %354 = vector.load %arg4[%c0_94, %c11_95, %c0_96, %c0_97] : memref<1x16x2x128xf32, #tpu.memory_space<vmem>>, vector<1x1x2x128xf32>
    %355 = vector.shape_cast %354 : vector<1x1x2x128xf32> to vector<2x128xf32>
    %c0_98 = arith.constant 0 : index
    %c12_99 = arith.constant 12 : index
    %c0_100 = arith.constant 0 : index
    %c0_101 = arith.constant 0 : index
    %356 = vector.load %arg4[%c0_98, %c12_99, %c0_100, %c0_101] : memref<1x16x2x128xf32, #tpu.memory_space<vmem>>, vector<1x1x2x128xf32>
    %357 = vector.shape_cast %356 : vector<1x1x2x128xf32> to vector<2x128xf32>
    %358 = vector.broadcast %25 : f32 to vector<2x128xf32>
    %359 = arith.mulf %358, %353 : vector<2x128xf32>
    %360 = vector.broadcast %27 : f32 to vector<2x128xf32>
    %361 = arith.mulf %360, %355 : vector<2x128xf32>
    %362 = arith.addf %359, %361 : vector<2x128xf32>
    %363 = vector.broadcast %29 : f32 to vector<2x128xf32>
    %364 = arith.addf %362, %363 : vector<2x128xf32>
    %365 = vector.broadcast %31 : f32 to vector<2x128xf32>
    %366 = arith.mulf %365, %353 : vector<2x128xf32>
    %367 = vector.broadcast %33 : f32 to vector<2x128xf32>
    %368 = arith.mulf %367, %355 : vector<2x128xf32>
    %369 = arith.addf %366, %368 : vector<2x128xf32>
    %370 = vector.broadcast %35 : f32 to vector<2x128xf32>
    %371 = arith.addf %369, %370 : vector<2x128xf32>
    %372 = vector.broadcast %37 : f32 to vector<2x128xf32>
    %373 = arith.mulf %372, %353 : vector<2x128xf32>
    %374 = vector.broadcast %39 : f32 to vector<2x128xf32>
    %375 = arith.mulf %374, %355 : vector<2x128xf32>
    %376 = arith.addf %373, %375 : vector<2x128xf32>
    %377 = vector.broadcast %41 : f32 to vector<2x128xf32>
    %378 = arith.addf %376, %377 : vector<2x128xf32>
    %379 = arith.mulf %364, %364 : vector<2x128xf32>
    %380 = arith.mulf %371, %371 : vector<2x128xf32>
    %381 = arith.addf %379, %380 : vector<2x128xf32>
    %382 = arith.mulf %378, %378 : vector<2x128xf32>
    %383 = arith.addf %381, %382 : vector<2x128xf32>
    %384 = math.rsqrt %383 : vector<2x128xf32>
    %385 = arith.mulf %364, %384 : vector<2x128xf32>
    %386 = arith.mulf %371, %384 : vector<2x128xf32>
    %387 = arith.mulf %378, %384 : vector<2x128xf32>
    %388 = vector.broadcast %1 : f32 to vector<2x128xf32>
    %389 = arith.mulf %388, %385 : vector<2x128xf32>
    %390 = vector.broadcast %3 : f32 to vector<2x128xf32>
    %391 = arith.mulf %390, %386 : vector<2x128xf32>
    %392 = arith.addf %389, %391 : vector<2x128xf32>
    %393 = vector.broadcast %5 : f32 to vector<2x128xf32>
    %394 = arith.mulf %393, %387 : vector<2x128xf32>
    %395 = arith.addf %392, %394 : vector<2x128xf32>
    %396 = arith.mulf %395, %357 : vector<2x128xf32>
    %397 = vector.broadcast %7 : f32 to vector<2x128xf32>
    %398 = arith.addf %397, %396 : vector<2x128xf32>
    %c0_102 = arith.constant 0 : index
    %c0_103 = arith.constant 0 : index
    %c0_104 = arith.constant 0 : index
    %c0_105 = arith.constant 0 : index
    %399 = vector.load %arg5[%c0_102, %c0_103, %c0_104, %c0_105] : memref<1x22x2x128xf32, #tpu.memory_space<vmem>>, vector<1x1x2x128xf32>
    %400 = vector.shape_cast %399 : vector<1x1x2x128xf32> to vector<2x128xf32>
    %401 = vector.shape_cast %398 : vector<2x128xf32> to vector<1x1x2x128xf32>
    tpu.vector_store %arg5[%c0_102, %c0_103, %c0_104, %c0_105], %401 {strides = array<i32>} : memref<1x22x2x128xf32, #tpu.memory_space<vmem>>, vector<1x1x2x128xf32>,
    %402 = vector.broadcast %9 : f32 to vector<2x128xf32>
    %403 = arith.mulf %402, %385 : vector<2x128xf32>
    %404 = vector.broadcast %11 : f32 to vector<2x128xf32>
    %405 = arith.mulf %404, %386 : vector<2x128xf32>
    %406 = arith.addf %403, %405 : vector<2x128xf32>
    %407 = vector.broadcast %13 : f32 to vector<2x128xf32>
    %408 = arith.mulf %407, %387 : vector<2x128xf32>
    %409 = arith.addf %406, %408 : vector<2x128xf32>
    %410 = arith.mulf %409, %357 : vector<2x128xf32>
    %411 = vector.broadcast %15 : f32 to vector<2x128xf32>
    %412 = arith.addf %411, %410 : vector<2x128xf32>
    %c0_106 = arith.constant 0 : index
    %c1_107 = arith.constant 1 : index
    %c0_108 = arith.constant 0 : index
    %c0_109 = arith.constant 0 : index
    %413 = vector.load %arg5[%c0_106, %c1_107, %c0_108, %c0_109] : memref<1x22x2x128xf32, #tpu.memory_space<vmem>>, vector<1x1x2x128xf32>
    %414 = vector.shape_cast %413 : vector<1x1x2x128xf32> to vector<2x128xf32>
    %415 = vector.shape_cast %412 : vector<2x128xf32> to vector<1x1x2x128xf32>
    tpu.vector_store %arg5[%c0_106, %c1_107, %c0_108, %c0_109], %415 {strides = array<i32>} : memref<1x22x2x128xf32, #tpu.memory_space<vmem>>, vector<1x1x2x128xf32>,
    %416 = vector.broadcast %17 : f32 to vector<2x128xf32>
    %417 = arith.mulf %416, %385 : vector<2x128xf32>
    %418 = vector.broadcast %19 : f32 to vector<2x128xf32>
    %419 = arith.mulf %418, %386 : vector<2x128xf32>
    %420 = arith.addf %417, %419 : vector<2x128xf32>
    %421 = vector.broadcast %21 : f32 to vector<2x128xf32>
    %422 = arith.mulf %421, %387 : vector<2x128xf32>
    %423 = arith.addf %420, %422 : vector<2x128xf32>
    %424 = arith.mulf %423, %357 : vector<2x128xf32>
    %425 = vector.broadcast %23 : f32 to vector<2x128xf32>
    %426 = arith.addf %425, %424 : vector<2x128xf32>
    %c0_110 = arith.constant 0 : index
    %c2_111 = arith.constant 2 : index
    %c0_112 = arith.constant 0 : index
    %c0_113 = arith.constant 0 : index
    %427 = vector.load %arg5[%c0_110, %c2_111, %c0_112, %c0_113] : memref<1x22x2x128xf32, #tpu.memory_space<vmem>>, vector<1x1x2x128xf32>
    %428 = vector.shape_cast %427 : vector<1x1x2x128xf32> to vector<2x128xf32>
    %429 = vector.shape_cast %426 : vector<2x128xf32> to vector<1x1x2x128xf32>
    tpu.vector_store %arg5[%c0_110, %c2_111, %c0_112, %c0_113], %429 {strides = array<i32>} : memref<1x22x2x128xf32, #tpu.memory_space<vmem>>, vector<1x1x2x128xf32>,
    %c0_114 = arith.constant 0 : index
    %c13 = arith.constant 13 : index
    %c0_115 = arith.constant 0 : index
    %c0_116 = arith.constant 0 : index
    %430 = vector.load %arg4[%c0_114, %c13, %c0_115, %c0_116] : memref<1x16x2x128xf32, #tpu.memory_space<vmem>>, vector<1x1x2x128xf32>
    %431 = vector.shape_cast %430 : vector<1x1x2x128xf32> to vector<2x128xf32>
    %cst_117 = arith.constant 5.000000e-01 : f32
    %432 = vector.broadcast %cst_117 : f32 to vector<2x128xf32>
    %433 = arith.subf %431, %432 : vector<2x128xf32>
    %cst_118 = arith.constant 3.54490781 : f32
    %434 = vector.broadcast %cst_118 : f32 to vector<2x128xf32>
    %435 = arith.mulf %433, %434 : vector<2x128xf32>
    %c0_119 = arith.constant 0 : index
    %c7_120 = arith.constant 7 : index
    %c0_121 = arith.constant 0 : index
    %c0_122 = arith.constant 0 : index
    %436 = vector.load %arg4[%c0_119, %c7_120, %c0_121, %c0_122] : memref<1x16x2x128xf32, #tpu.memory_space<vmem>>, vector<1x1x2x128xf32>
    %437 = vector.shape_cast %436 : vector<1x1x2x128xf32> to vector<2x128xf32>
    %438 = arith.addf %437, %435 : vector<2x128xf32>
    %c0_123 = arith.constant 0 : index
    %c19 = arith.constant 19 : index
    %c0_124 = arith.constant 0 : index
    %c0_125 = arith.constant 0 : index
    %439 = vector.load %arg5[%c0_123, %c19, %c0_124, %c0_125] : memref<1x22x2x128xf32, #tpu.memory_space<vmem>>, vector<1x1x2x128xf32>
    %440 = vector.shape_cast %439 : vector<1x1x2x128xf32> to vector<2x128xf32>
    %441 = vector.shape_cast %438 : vector<2x128xf32> to vector<1x1x2x128xf32>
    tpu.vector_store %arg5[%c0_123, %c19, %c0_124, %c0_125], %441 {strides = array<i32>} : memref<1x22x2x128xf32, #tpu.memory_space<vmem>>, vector<1x1x2x128xf32>,
    %c0_126 = arith.constant 0 : index
    %c14 = arith.constant 14 : index
    %c0_127 = arith.constant 0 : index
    %c0_128 = arith.constant 0 : index
    %442 = vector.load %arg4[%c0_126, %c14, %c0_127, %c0_128] : memref<1x16x2x128xf32, #tpu.memory_space<vmem>>, vector<1x1x2x128xf32>
    %443 = vector.shape_cast %442 : vector<1x1x2x128xf32> to vector<2x128xf32>
    %cst_129 = arith.constant 5.000000e-01 : f32
    %444 = vector.broadcast %cst_129 : f32 to vector<2x128xf32>
    %445 = arith.subf %443, %444 : vector<2x128xf32>
    %cst_130 = arith.constant 3.54490781 : f32
    %446 = vector.broadcast %cst_130 : f32 to vector<2x128xf32>
    %447 = arith.mulf %445, %446 : vector<2x128xf32>
    %c0_131 = arith.constant 0 : index
    %c8_132 = arith.constant 8 : index
    %c0_133 = arith.constant 0 : index
    %c0_134 = arith.constant 0 : index
    %448 = vector.load %arg4[%c0_131, %c8_132, %c0_133, %c0_134] : memref<1x16x2x128xf32, #tpu.memory_space<vmem>>, vector<1x1x2x128xf32>
    %449 = vector.shape_cast %448 : vector<1x1x2x128xf32> to vector<2x128xf32>
    %450 = arith.addf %449, %447 : vector<2x128xf32>
    %c0_135 = arith.constant 0 : index
    %c20 = arith.constant 20 : index
    %c0_136 = arith.constant 0 : index
    %c0_137 = arith.constant 0 : index
    %451 = vector.load %arg5[%c0_135, %c20, %c0_136, %c0_137] : memref<1x22x2x128xf32, #tpu.memory_space<vmem>>, vector<1x1x2x128xf32>
    %452 = vector.shape_cast %451 : vector<1x1x2x128xf32> to vector<2x128xf32>
    %453 = vector.shape_cast %450 : vector<2x128xf32> to vector<1x1x2x128xf32>
    tpu.vector_store %arg5[%c0_135, %c20, %c0_136, %c0_137], %453 {strides = array<i32>} : memref<1x22x2x128xf32, #tpu.memory_space<vmem>>, vector<1x1x2x128xf32>,
    %c0_138 = arith.constant 0 : index
    %c15_139 = arith.constant 15 : index
    %c0_140 = arith.constant 0 : index
    %c0_141 = arith.constant 0 : index
    %454 = vector.load %arg4[%c0_138, %c15_139, %c0_140, %c0_141] : memref<1x16x2x128xf32, #tpu.memory_space<vmem>>, vector<1x1x2x128xf32>
    %455 = vector.shape_cast %454 : vector<1x1x2x128xf32> to vector<2x128xf32>
    %cst_142 = arith.constant 5.000000e-01 : f32
    %456 = vector.broadcast %cst_142 : f32 to vector<2x128xf32>
    %457 = arith.subf %455, %456 : vector<2x128xf32>
    %cst_143 = arith.constant 3.54490781 : f32
    %458 = vector.broadcast %cst_143 : f32 to vector<2x128xf32>
    %459 = arith.mulf %457, %458 : vector<2x128xf32>
    %c0_144 = arith.constant 0 : index
    %c9_145 = arith.constant 9 : index
    %c0_146 = arith.constant 0 : index
    %c0_147 = arith.constant 0 : index
    %460 = vector.load %arg4[%c0_144, %c9_145, %c0_146, %c0_147] : memref<1x16x2x128xf32, #tpu.memory_space<vmem>>, vector<1x1x2x128xf32>
    %461 = vector.shape_cast %460 : vector<1x1x2x128xf32> to vector<2x128xf32>
    %462 = arith.addf %461, %459 : vector<2x128xf32>
    %c0_148 = arith.constant 0 : index
    %c21 = arith.constant 21 : index
    %c0_149 = arith.constant 0 : index
    %c0_150 = arith.constant 0 : index
    %463 = vector.load %arg5[%c0_148, %c21, %c0_149, %c0_150] : memref<1x22x2x128xf32, #tpu.memory_space<vmem>>, vector<1x1x2x128xf32>
    %464 = vector.shape_cast %463 : vector<1x1x2x128xf32> to vector<2x128xf32>
    %465 = vector.shape_cast %462 : vector<2x128xf32> to vector<1x1x2x128xf32>
    tpu.vector_store %arg5[%c0_148, %c21, %c0_149, %c0_150], %465 {strides = array<i32>} : memref<1x22x2x128xf32, #tpu.memory_space<vmem>>, vector<1x1x2x128xf32>,
    return
  }
  func.func @transform_0(%arg0: i32, %arg1: i32, %arg2: memref<2x16xf32, #tpu.memory_space<smem>>, %arg3: memref<2x9xf32, #tpu.memory_space<smem>>) -> (i32, i32, i32, i32) {
    %c0_i32 = arith.constant 0 : i32
    %c0_i32_0 = arith.constant 0 : i32
    %c0_i32_1 = arith.constant 0 : i32
    return %arg0, %c0_i32, %arg1, %c0_i32_0 : i32, i32, i32, i32
  }
  func.func @transform_1(%arg0: i32, %arg1: i32, %arg2: memref<2x16xf32, #tpu.memory_space<smem>>, %arg3: memref<2x9xf32, #tpu.memory_space<smem>>) -> (i32, i32, i32, i32) {
    %c0_i32 = arith.constant 0 : i32
    %c0_i32_0 = arith.constant 0 : i32
    %c0_i32_1 = arith.constant 0 : i32
    return %arg0, %c0_i32, %arg1, %c0_i32_0 : i32, i32, i32, i32
  }
}

</mosaic_0001>

<llo_original>
// kernel: tpu_custom_call.1
$region0: #{tpu_custom_call.1}
  #allocation0 [shape = 'u32[]', space=smem, size = 0x4, offset = 0x4, fixed_abs, tag = 'smem constant byte address 0x4 - core index']
  #allocation1 [shape = 'u32[72,128]{1,0:T(1,128)}', space=vmem, size = 0x9000, scoped, tag = 'internal scratch']
  #allocation2 [shape = 's32[1]{0}', space=sflag, size = 0x4, scoped, tag = 'scoped memory for tpu_custom_call.1']
  #allocation3 [shape = 'u8[1024]{0}', space=smem, size = 0x400, scoped, tag = 'prefetched SMEM operand 0']
  #allocation4 [shape = 'u8[1024]{0}', space=smem, size = 0x400, scoped, tag = 'prefetched SMEM operand 1']
  %s0 = inlined_call_operand.hbm [shape: f32[2,16], index: 0, kind: input, shape index: {}]
  %s1 = inlined_call_operand.hbm [shape: f32[2,9], index: 1, kind: input, shape index: {}]
  %s2 = inlined_call_operand.hbm [shape: f32[2,16,2,128], index: 2, kind: input, shape index: {}]
  %s3 = inlined_call_operand.hbm [shape: f32[2,22,2,128], index: 3, kind: output, shape index: {}]
  %s4 = sld [smem:[#allocation0]]
  $region41: #{tpu_custom_call.1} parent=0
    _
  %s6 = ssub.s32 1, %s4
  %s7 = scalar_select 0, %s6, %s4
  %s9 = sshll.u32 %s0, 4
  %s10 = int_to_ptr.hbm [resolvable:$true] %s9
  %12 = dma.hbm_to_smem %s10, 32, [#allocation3], [#allocation2]
  %s14 = sshll.u32 %s1, 4
  %s15 = int_to_ptr.hbm [resolvable:$true] %s14
  %17 = dma.hbm_to_smem %s15, 32, [#allocation4], [#allocation2]
  %19 = dma.done [#allocation2], 64
  %20 = sfence
  $region1: #{tpu_custom_call.1} parent=0
    #allocation5 [shape = 'u8[32768]{0}', space=vmem, size = 0x8000, scoped, tag = 'input window, operand 2']
    #allocation6 [shape = 's32[2]{0}', space=sflag, size = 0x8, scoped, tag = 'scoped memory for tpu_custom_call.1']
    #allocation7 [shape = 's32[2]{0}', space=sflag, size = 0x8, scoped, tag = 'scoped memory for tpu_custom_call.1']
    #allocation8 [shape = 'u8[45056]{0}', space=vmem, size = 0xb000, scoped, tag = 'output window, operand 0']
    %21 = vsyncpa [#allocation6], 0
    %s22 = scalar_lea.sflag [#allocation6], 1
    %23 = vsyncpa %s22, 0
    %24 = vsyncpa [#allocation7], 0
    %s25 = scalar_lea.sflag [#allocation7], 1
    %26 = vsyncpa %s25, 0
    loop: start=0, step=1, limit=4
    $region2: #{tpu_custom_call.1} parent=1 // loop_pre_header
      _
    $region3: #{tpu_custom_call.1} parent=1 // loop_header
      %s28 = sphi 0, %s32
      %p29 = scmp.ge.s32.totalorder %s28, 4
      %s35 = sphi 0, %s47
      %s36 = sphi 0, %s43
      %s37 = sphi 0, %s35
      %s38 = sphi 0, %s36
      %s39 = sphi 0, %s37
      %s40 = sphi 0, %s38
      %s52 = sphi 0, %s54
      %s55 = sphi 0, %s52
      %s56 = sphi 0, %s55
      %s72 = sphi 0, %s56
      %s80 = sphi 0, %s82
      %s83 = sphi 0, %s80
      %s84 = sphi 0, %s83
      %s100 = sphi 0, %s84
    $region4: #{tpu_custom_call.1} parent=1 // loop_header_branch
      %31 = sbr.rel (%p29) target = $region8
    $region5: #{tpu_custom_call.1} parent=1 // loop_body
      %s33 = ssub.s32 %s28, 1
      %s34 = ssub.s32 %s28, 2
      %s41 = sadd.s32 1, %s36
      %p42 = scmp.ge.s32.totalorder %s41, 1
      %s43 = scalar_select %p42, 0, %s41
      %s44 = sadd.s32 1, %s35
      %s45 = scalar_select %p42, %s44, %s35
      %p46 = scmp.ge.s32.totalorder %s45, 2
      %s47 = scalar_select %p46, 0, %s45
      %s48 = ssub.s32 %s35, %s47
      %s49 = ssub.s32 %s36, %s43
      %s50 = sor.u32 %s48, %s49
      %p51 = scmp.eq.s32.totalorder %s50, 0
      %s53 = sadd.s32 %s52, 1
      %s54 = scalar_select %p51, %s52, %s53
      %p57 = pneg %p51
      %p58 = scmp.eq.s32.totalorder %s28, 1
      %p59 = por %p57, %p58
      %p60 = scmp.ne.s32.totalorder %s52, %s55
      %p61 = scmp.eq.s32.totalorder %s28, 0
      %p62 = por %p60, %p61
      %p63 = scmp.ne.s32.totalorder %s52, %s55
      %p64 = scmp.eq.s32.totalorder %s33, 1
      %p65 = por %p63, %p64
      %p66 = scmp.ne.s32.totalorder %s55, %s56
      %p67 = scmp.eq.s32.totalorder %s33, 0
      %p68 = por %p66, %p67
      %p69 = scmp.ne.s32.totalorder %s55, %s56
      %p70 = scmp.eq.s32.totalorder %s34, 1
      %p71 = por %p69, %p70
      %p73 = scmp.ne.s32.totalorder %s56, %s72
      %p74 = scmp.eq.s32.totalorder %s34, 0
      %p75 = por %p73, %p74
      %s76 = ssub.s32 %s35, %s47
      %s77 = ssub.s32 %s36, %s43
      %s78 = sor.u32 %s76, %s77
      %p79 = scmp.eq.s32.totalorder %s78, 0
      %s81 = sadd.s32 %s80, 1
      %s82 = scalar_select %p79, %s80, %s81
      %p85 = pneg %p79
      %p86 = scmp.eq.s32.totalorder %s28, 1
      %p87 = por %p85, %p86
      %p88 = scmp.ne.s32.totalorder %s80, %s83
      %p89 = scmp.eq.s32.totalorder %s28, 0
      %p90 = por %p88, %p89
      %p91 = scmp.ne.s32.totalorder %s80, %s83
      %p92 = scmp.eq.s32.totalorder %s33, 1
      %p93 = por %p91, %p92
      %p94 = scmp.ne.s32.totalorder %s83, %s84
      %p95 = scmp.eq.s32.totalorder %s33, 0
      %p96 = por %p94, %p95
      %p97 = scmp.ne.s32.totalorder %s83, %s84
      %p98 = scmp.eq.s32.totalorder %s34, 1
      %p99 = por %p97, %p98
      %p101 = scmp.ne.s32.totalorder %s84, %s100
      %p102 = scmp.eq.s32.totalorder %s34, 0
      %p103 = por %p101, %p102
      %p104 = scmp.le.s32.totalorder 1, %s28
      %p105 = scmp.lt.s32.totalorder %s28, 3
      %p106 = pnand %p104, %p105
      %p107 = pneg %p106
      // Predicated region
      $region9: #{tpu_custom_call.1} parent=5 // pred_check
        _
      $region10: #{tpu_custom_call.1} parent=5 // pred_check_branch
        %109 = sbr.rel (%p106) target = $region12
      $region11: #{tpu_custom_call.1} parent=5 // pred_region
        %s110 = ssub.s32 %s28, 1
      $region12: #{tpu_custom_call.1} parent=5 // pred_fallthru
        _
      %p111 = scmp.lt.s32.totalorder %s28, 2
      // Predicated region
      $region13: #{tpu_custom_call.1} parent=5 // pred_check
        %p112 = pneg %p111
      $region14: #{tpu_custom_call.1} parent=5 // pred_check_branch
        %114 = sbr.rel (%p112) target = $region16
      $region15: #{tpu_custom_call.1} parent=5 // pred_region
        // Predicated region
        $region17: #{tpu_custom_call.1} parent=15 // pred_check
          %p115 = pneg %p62
        $region18: #{tpu_custom_call.1} parent=15 // pred_check_branch
          %117 = sbr.rel (%p115) target = $region20
        $region19: #{tpu_custom_call.1} parent=15 // pred_region
          %s118 = sand.u32 %s52, 1
          %s119 = scalar_lea.sflag [#allocation6], %s118
          %s120 = sand.u32 %s52, 1
          %s121 = smul.addr %s120, 32
          %s122 = scalar_lea.vmem [#allocation5], %s121
          %124 = vsyncadd %s119, 0
          %s125 = smul.addr %s35, 16
          %s126 = sadd.s32 %s36, %s125
          %s127 = smul.addr %s126, 2
          %s128 = scalar_lea.hbm %s2, %s127
          %s129 = sshll.u32 %s128, 4
          %s130 = int_to_ptr.hbm [resolvable:$true] %s129
          %s131 = sshll.u32 %s122, 4
          %s132 = int_to_ptr.vmem [resolvable:$true] %s131
          %137 = dma.hbm_to_vmem [thread:$0]  %s130, 512, %s132, %s119, 32, 32, 2
        $region20: #{tpu_custom_call.1} parent=15 // pred_fallthru
          _
      $region16: #{tpu_custom_call.1} parent=5 // pred_fallthru
        _
      %p138 = scmp.le.s32.totalorder 1, %s28
      %p139 = scmp.lt.s32.totalorder %s28, 3
      %p140 = pnand %p138, %p139
      %p141 = pneg %p140
      // Predicated region
      $region21: #{tpu_custom_call.1} parent=5 // pred_check
        _
      $region22: #{tpu_custom_call.1} parent=5 // pred_check_branch
        %143 = sbr.rel (%p140) target = $region24
      $region23: #{tpu_custom_call.1} parent=5 // pred_region
        %s144 = ssub.s32 %s28, 1
        %s145 = sand.u32 %s55, 1
        %s146 = scalar_lea.sflag [#allocation6], %s145
        %s147 = sand.u32 %s55, 1
        %s148 = smul.addr %s147, 32
        %s149 = scalar_lea.vmem [#allocation5], %s148
        // Predicated region
        $region25: #{tpu_custom_call.1} parent=23 // pred_check
          %p150 = pneg %p68
        $region26: #{tpu_custom_call.1} parent=23 // pred_check_branch
          %152 = sbr.rel (%p150) target = $region28
        $region27: #{tpu_custom_call.1} parent=23 // pred_region
          %154 = dma.done %s146, 512
        $region28: #{tpu_custom_call.1} parent=23 // pred_fallthru
          _
        %s155 = sand.u32 %s55, 1
        %s156 = scalar_lea.sflag [#allocation6], %s155
        %s157 = sand.u32 %s55, 1
        %s158 = smul.addr %s157, 32
        %s159 = scalar_lea.vmem [#allocation5], %s158
        %p160 = pneg %p68
        %p161 = pneg %p65
        %p162 = pneg %p96
        %p163 = pneg %p93
        %s164 = sand.u32 %s83, 1
        %s165 = scalar_lea.sflag [#allocation7], %s164
        %s166 = sand.u32 %s83, 1
        %s167 = smul.addr %s166, 44
        %s168 = scalar_lea.vmem [#allocation8], %s167
        %s169 = smul.u32 %s37, 128
        %s170 = sld [smem:[#allocation3 + %s169]]
        %s171 = sadd.s32 %s169, 1
        %s172 = sld [smem:[#allocation3 + %s171]]
        %s173 = sadd.s32 %s169, 2
        %s174 = sld [smem:[#allocation3 + %s173]]
        %s175 = sadd.s32 %s169, 3
        %s176 = sld [smem:[#allocation3 + %s175]]
        %s177 = sadd.s32 %s169, 4
        %s178 = sld [smem:[#allocation3 + %s177]]
        %s179 = sadd.s32 %s169, 5
        %s180 = sld [smem:[#allocation3 + %s179]]
        %s181 = sadd.s32 %s169, 6
        %s182 = sld [smem:[#allocation3 + %s181]]
        %s183 = sadd.s32 %s169, 7
        %s184 = sld [smem:[#allocation3 + %s183]]
        %s185 = sadd.s32 %s169, 8
        %s186 = sld [smem:[#allocation3 + %s185]]
        %s187 = sadd.s32 %s169, 9
        %s188 = sld [smem:[#allocation3 + %s187]]
        %s189 = sadd.s32 %s169, 10
        %s190 = sld [smem:[#allocation3 + %s189]]
        %s191 = sadd.s32 %s169, 11
        %s192 = sld [smem:[#allocation3 + %s191]]
        %s193 = sld [smem:[#allocation4 + %s169]]
        %s194 = sld [smem:[#allocation4 + %s171]]
        %s195 = sld [smem:[#allocation4 + %s173]]
        %s196 = sld [smem:[#allocation4 + %s175]]
        %s197 = sld [smem:[#allocation4 + %s177]]
        %s198 = sld [smem:[#allocation4 + %s179]]
        %s199 = sld [smem:[#allocation4 + %s181]]
        %s200 = sld [smem:[#allocation4 + %s183]]
        %s201 = sld [smem:[#allocation4 + %s185]]
        %v202 = vld [vmem:[%s149] sm:$0x3]
        %v203 = vld [vmem:[%s149 + $0x2] sm:$0x3]
        %v204 = vld [vmem:[%s149 + $0x4] sm:$0x3]
        %v205 = vsub.f32 %v202, 4.0
        %v206 = vsub.f32 %v203, 4.0
        %v207 = vsub.f32 %v204, 4.0
        %v208 = vmax.f32 %v205, 0.0
        %v209 = vmax.f32 %v206, 0.0
        %v210 = vmax.f32 %v207, 0.0
        %vm211 = vcmp.ne.f32.partialorder %v205, %v205
        %vm212 = vcmp.ne.f32.partialorder %v206, %v206
        %vm213 = vcmp.ne.f32.partialorder %v207, %v207
        %v214 = vadd.f32 %v205, 0.0
        %v215 = vadd.f32 %v206, 0.0
        %v216 = vadd.f32 %v207, 0.0
        %v217 = vand.u32 2147483647, %v205
        %v218 = vand.u32 2147483647, %v206
        %v219 = vand.u32 2147483647, %v207
        %v220 = vsub.f32 0.0, %v217
        %v221 = vsub.f32 0.0, %v218
        %v222 = vsub.f32 0.0, %v219
        %v223 = vmul.f32 %v220, 1.442695
        %v224 = vpow.pop %v223
        %v225 = vmul.f32 %v221, 1.442695
        %v226 = vpow.pop %v225
        %v227 = vmul.f32 %v222, 1.442695
        %v228 = vpow.pop %v227
        %v229 = vadd.f32 %v224, 1.0
        %v230 = vlog2.pop %v229
        %v231 = vmul.f32 %v230, 0.6931472
        %v232 = vmul.f32 -0.5, %v224
        %v233 = vadd.f32 %v232, 1.0
        %v234 = vmul.f32 %v233, %v224
        %v235 = vand.u32 2147483647, %v224
        %vm236 = vcmp.lt.f32.partialorder %v235, 0.0004427343
        %v237 = vsel %vm236, %v234, %v231
        %v238 = vadd.f32 %v226, 1.0
        %v239 = vlog2.pop %v238
        %v240 = vmul.f32 %v239, 0.6931472
        %v241 = vmul.f32 -0.5, %v226
        %v242 = vadd.f32 %v241, 1.0
        %v243 = vmul.f32 %v242, %v226
        %v244 = vand.u32 2147483647, %v226
        %vm245 = vcmp.lt.f32.partialorder %v244, 0.0004427343
        %v246 = vsel %vm245, %v243, %v240
        %v247 = vadd.f32 %v228, 1.0
        %v248 = vlog2.pop %v247
        %v249 = vmul.f32 %v248, 0.6931472
        %v250 = vmul.f32 -0.5, %v228
        %v251 = vadd.f32 %v250, 1.0
        %v252 = vmul.f32 %v251, %v228
        %v253 = vand.u32 2147483647, %v228
        %vm254 = vcmp.lt.f32.partialorder %v253, 0.0004427343
        %v255 = vsel %vm254, %v252, %v249
        %v256 = vadd.f32 %v208, %v237
        %v257 = vadd.f32 %v209, %v246
        %v258 = vadd.f32 %v210, %v255
        %v259 = vsel %vm211, %v214, %v256
        %v260 = vsel %vm212, %v215, %v257
        %v261 = vsel %vm213, %v216, %v258
        %v262 = vmax.f32 %v259, 0.001
        %v263 = vmax.f32 %v260, 0.001
        %v264 = vmax.f32 %v261, 0.001
        %v265 = vmin.f32 %v262, 0.3
        %v266 = vmin.f32 %v263, 0.3
        %v267 = vmin.f32 %v264, 0.3
        %s268 = scalar_lea.vmem %s168, 24 [#allocation8]
        %269 = vst [vmem:[%s268] sm:$0x3] %v265
        %270 = vst [vmem:[%s268 + $0x2] sm:$0x3] %v266
        %271 = vst [vmem:[%s268 + $0x4] sm:$0x3] %v267
        %s272 = scalar_lea.vmem %s149, 6 [#allocation5]
        %v273 = vld [vmem:[%s272] sm:$0x3]
        %s274 = scalar_lea.vmem %s149, 8 [#allocation5]
        %v275 = vld [vmem:[%s274] sm:$0x3]
        %s276 = scalar_lea.vmem %s149, 10 [#allocation5]
        %v277 = vld [vmem:[%s276] sm:$0x3]
        %s278 = scalar_lea.vmem %s149, 12 [#allocation5]
        %v279 = vld [vmem:[%s278] sm:$0x3]
        %v280 = vmul.f32 %v273, %v273
        %v281 = vmul.f32 %v275, %v275
        %v282 = vadd.f32 %v280, %v281
        %v283 = vmul.f32 %v277, %v277
        %v284 = vadd.f32 %v282, %v283
        %v285 = vmul.f32 %v279, %v279
        %v286 = vadd.f32 %v284, %v285
        %v287 = vrsqrt.pop %v286
        %v288 = vmul.f32 %v287, %v286
        %v289 = vmul.f32 %v288, %v287
        %v290 = vmul.f32 0.5, %v289
        %v291 = vsub.f32 1.5, %v290
        %v292 = vmul.f32 %v287, %v291
        %v293 = vmul.f32 %v286, %v292
        %vm294 = vcmp.eq.f32.partialorder %v286, inf
        %v295 = vsel %vm294, %v286, %v293
        %vm296 = vcmp.eq.f32.partialorder %v286, 0.0
        %v297 = vand.u32 %v286, 2147483648
        %v298 = vsel %vm296, %v297, %v295
        %v299 = vadd.f32 %v298, 1e-08
        %v300 = vrcp.pop %v299
        %v301 = vmul.f32 %v299, %v300
        %v302 = vsub.f32 1.0, %v301
        %v303 = vmul.f32 %v300, %v302
        %v304 = vadd.f32 %v300, %v303
        %vm305 = vweird.f32 %v299
        %vm306 = vweird.f32 %v300
        %vm307 = vmor %vm305, %vm306
        %v308 = vsel %vm307, %v300, %v304
        %v309 = vand.u32 2147483647, %v299
        %vm310 = vcmp.eq.f32.partialorder %v309, 8.507059e+37
        %v311 = vand.u32 %v299, 2147483648
        %v312 = vor.u32 1.1754944e-38, %v311
        %v313 = vsel %vm310, %v312, %v308
        %v314 = vmul.f32 %v273, %v313
        %v315 = vmul.f32 %v275, %v313
        %v316 = vmul.f32 %v277, %v313
        %v317 = vmul.f32 %v279, %v313
        %s318 = scalar_lea.vmem %s168, 30 [#allocation8]
        %319 = vst [vmem:[%s318] sm:$0x3] %v314
        %s320 = scalar_lea.vmem %s168, 32 [#allocation8]
        %321 = vst [vmem:[%s320] sm:$0x3] %v315
        %s322 = scalar_lea.vmem %s168, 34 [#allocation8]
        %323 = vst [vmem:[%s322] sm:$0x3] %v316
        %s324 = scalar_lea.vmem %s168, 36 [#allocation8]
        %325 = vst [vmem:[%s324] sm:$0x3] %v317
        %v326 = vmul.f32 %v313, %v313
        %v327 = vmul.f32 %v286, %v326
        %v328 = vadd.f32 %v327, 1e-08
        %v329 = vrcp.pop %v328
        %v330 = vmul.f32 %v328, %v329
        %v331 = vsub.f32 1.0, %v330
        %v332 = vmul.f32 %v329, %v331
        %v333 = vadd.f32 %v329, %v332
        %vm334 = vweird.f32 %v328
        %vm335 = vweird.f32 %v329
        %vm336 = vmor %vm334, %vm335
        %v337 = vsel %vm336, %v329, %v333
        %v338 = vand.u32 2147483647, %v328
        %vm339 = vcmp.eq.f32.partialorder %v338, 8.507059e+37
        %v340 = vand.u32 %v328, 2147483648
        %v341 = vor.u32 1.1754944e-38, %v340
        %v342 = vsel %vm339, %v341, %v337
        %v343 = vmul.f32 %v342, 2.0
        %v344 = vmul.f32 %v315, %v315
        %v345 = vmul.f32 %v316, %v316
        %v346 = vadd.f32 %v344, %v345
        %v347 = vmul.f32 %v343, %v346
        %v348 = vsub.f32 1.0, %v347
        %v349 = vmul.f32 %v314, %v315
        %v350 = vmul.f32 %v316, %v317
        %v351 = vsub.f32 %v349, %v350
        %v352 = vmul.f32 %v343, %v351
        %v353 = vmul.f32 %v314, %v316
        %v354 = vmul.f32 %v315, %v317
        %v355 = vadd.f32 %v353, %v354
        %v356 = vmul.f32 %v343, %v355
        %v357 = vadd.f32 %v349, %v350
        %v358 = vmul.f32 %v343, %v357
        %v359 = vmul.f32 %v314, %v314
        %v360 = vadd.f32 %v359, %v345
        %v361 = vmul.f32 %v343, %v360
        %v362 = vsub.f32 1.0, %v361
        %v363 = vmul.f32 %v315, %v316
        %v364 = vmul.f32 %v314, %v317
        %v365 = vsub.f32 %v363, %v364
        %v366 = vmul.f32 %v343, %v365
        %v367 = vsub.f32 %v353, %v354
        %v368 = vmul.f32 %v343, %v367
        %v369 = vadd.f32 %v363, %v364
        %v370 = vmul.f32 %v343, %v369
        %v371 = vadd.f32 %v359, %v344
        %v372 = vmul.f32 %v343, %v371
        %v373 = vsub.f32 1.0, %v372
        %v374 = vmul.f32 %v265, %v265
        %v375 = vmul.f32 %v266, %v266
        %v376 = vmul.f32 %v267, %v267
        %v377 = vmul.f32 %v348, %v374
        %v378 = vmul.f32 %v352, %v375
        %v379 = vmul.f32 %v356, %v376
        %v380 = vmul.f32 %v358, %v374
        %v381 = vmul.f32 %v362, %v375
        %v382 = vmul.f32 %v366, %v376
        %v383 = vmul.f32 %v368, %v374
        %v384 = vmul.f32 %v370, %v375
        %v385 = vmul.f32 %v373, %v376
        %v386 = vmul.f32 %v377, %v348
        %v387 = vmul.f32 %v378, %v352
        %v388 = vadd.f32 %v386, %v387
        %v389 = vmul.f32 %v379, %v356
        %v390 = vadd.f32 %v388, %v389
        %v391 = vmul.f32 %v377, %v358
        %v392 = vmul.f32 %v378, %v362
        %v393 = vadd.f32 %v391, %v392
        %v394 = vmul.f32 %v379, %v366
        %v395 = vadd.f32 %v393, %v394
        %v396 = vmul.f32 %v377, %v368
        %v397 = vmul.f32 %v378, %v370
        %v398 = vadd.f32 %v396, %v397
        %v399 = vmul.f32 %v379, %v373
        %v400 = vadd.f32 %v398, %v399
        %v401 = vmul.f32 %v380, %v358
        %v402 = vmul.f32 %v381, %v362
        %v403 = vadd.f32 %v401, %v402
        %v404 = vmul.f32 %v382, %v366
        %v405 = vadd.f32 %v403, %v404
        %v406 = vmul.f32 %v380, %v368
        %v407 = vmul.f32 %v381, %v370
        %v408 = vadd.f32 %v406, %v407
        %v409 = vmul.f32 %v382, %v373
        %v410 = vadd.f32 %v408, %v409
        %v411 = vmul.f32 %v383, %v368
        %v412 = vmul.f32 %v384, %v370
        %v413 = vadd.f32 %v411, %v412
        %v414 = vmul.f32 %v385, %v373
        %v415 = vadd.f32 %v413, %v414
        %v416 = vstv %s170
        %v417 = vmul.f32 %v416, %v390
        %v418 = vstv %s172
        %v419 = vmul.f32 %v418, %v395
        %v420 = vadd.f32 %v417, %v419
        %v421 = vstv %s174
        %v422 = vmul.f32 %v421, %v400
        %v423 = vadd.f32 %v420, %v422
        %v424 = vmul.f32 %v416, %v395
        %v425 = vmul.f32 %v418, %v405
        %v426 = vadd.f32 %v424, %v425
        %v427 = vmul.f32 %v421, %v410
        %v428 = vadd.f32 %v426, %v427
        %v429 = vmul.f32 %v416, %v400
        %v430 = vmul.f32 %v418, %v410
        %v431 = vadd.f32 %v429, %v430
        %v432 = vmul.f32 %v421, %v415
        %v433 = vadd.f32 %v431, %v432
        %v434 = vstv %s178
        %v435 = vmul.f32 %v434, %v390
        %v436 = vstv %s180
        %v437 = vmul.f32 %v436, %v395
        %v438 = vadd.f32 %v435, %v437
        %v439 = vstv %s182
        %v440 = vmul.f32 %v439, %v400
        %v441 = vadd.f32 %v438, %v440
        %v442 = vmul.f32 %v434, %v395
        %v443 = vmul.f32 %v436, %v405
        %v444 = vadd.f32 %v442, %v443
        %v445 = vmul.f32 %v439, %v410
        %v446 = vadd.f32 %v444, %v445
        %v447 = vmul.f32 %v434, %v400
        %v448 = vmul.f32 %v436, %v410
        %v449 = vadd.f32 %v447, %v448
        %v450 = vmul.f32 %v439, %v415
        %v451 = vadd.f32 %v449, %v450
        %v452 = vstv %s186
        %v453 = vmul.f32 %v452, %v390
        %v454 = vstv %s188
        %v455 = vmul.f32 %v454, %v395
        %v456 = vadd.f32 %v453, %v455
        %v457 = vstv %s190
        %v458 = vmul.f32 %v457, %v400
        %v459 = vadd.f32 %v456, %v458
        %v460 = vmul.f32 %v452, %v395
        %v461 = vmul.f32 %v454, %v405
        %v462 = vadd.f32 %v460, %v461
        %v463 = vmul.f32 %v457, %v410
        %v464 = vadd.f32 %v462, %v463
        %v465 = vmul.f32 %v452, %v400
        %v466 = vmul.f32 %v454, %v410
        %v467 = vadd.f32 %v465, %v466
        %v468 = vmul.f32 %v457, %v415
        %v469 = vadd.f32 %v467, %v468
        %v470 = vmul.f32 %v423, %v416
        %v471 = vmul.f32 %v428, %v418
        %v472 = vadd.f32 %v470, %v471
        %v473 = vmul.f32 %v433, %v421
        %v474 = vadd.f32 %v472, %v473
        %v475 = vmul.f32 %v423, %v434
        %v476 = vmul.f32 %v428, %v436
        %v477 = vadd.f32 %v475, %v476
        %v478 = vmul.f32 %v433, %v439
        %v479 = vadd.f32 %v477, %v478
        %v480 = vmul.f32 %v423, %v452
        %v481 = vmul.f32 %v428, %v454
        %v482 = vadd.f32 %v480, %v481
        %v483 = vmul.f32 %v433, %v457
        %v484 = vadd.f32 %v482, %v483
        %v485 = vmul.f32 %v441, %v434
        %v486 = vmul.f32 %v446, %v436
        %v487 = vadd.f32 %v485, %v486
        %v488 = vmul.f32 %v451, %v439
        %v489 = vadd.f32 %v487, %v488
        %v490 = vmul.f32 %v441, %v452
        %v491 = vmul.f32 %v446, %v454
        %v492 = vadd.f32 %v490, %v491
        %v493 = vmul.f32 %v451, %v457
        %v494 = vadd.f32 %v492, %v493
        %v495 = vmul.f32 %v459, %v452
        %v496 = vmul.f32 %v464, %v454
        %v497 = vadd.f32 %v495, %v496
        %v498 = vmul.f32 %v469, %v457
        %v499 = vadd.f32 %v497, %v498
        %s500 = scalar_lea.vmem %s168, 6 [#allocation8]
        %501 = vst [vmem:[%s500] sm:$0x3] %v474
        %s502 = scalar_lea.vmem %s168, 8 [#allocation8]
        %503 = vst [vmem:[%s502] sm:$0x3] %v479
        %s504 = scalar_lea.vmem %s168, 10 [#allocation8]
        %505 = vst [vmem:[%s504] sm:$0x3] %v484
        %s506 = scalar_lea.vmem %s168, 12 [#allocation8]
        %507 = vst [vmem:[%s506] sm:$0x3] %v479
        %s508 = scalar_lea.vmem %s168, 14 [#allocation8]
        %509 = vst [vmem:[%s508] sm:$0x3] %v489
        %s510 = scalar_lea.vmem %s168, 16 [#allocation8]
        %511 = vst [vmem:[%s510] sm:$0x3] %v494
        %s512 = scalar_lea.vmem %s168, 18 [#allocation8]
        %513 = vst [vmem:[%s512] sm:$0x3] %v484
        %s514 = scalar_lea.vmem %s168, 20 [#allocation8]
        %515 = vst [vmem:[%s514] sm:$0x3] %v494
        %s516 = scalar_lea.vmem %s168, 22 [#allocation8]
        %517 = vst [vmem:[%s516] sm:$0x3] %v499
        %s518 = scalar_lea.vmem %s149, 20 [#allocation5]
        %v519 = vld [vmem:[%s518] sm:$0x3]
        %s520 = scalar_lea.vmem %s149, 22 [#allocation5]
        %v521 = vld [vmem:[%s520] sm:$0x3]
        %s522 = scalar_lea.vmem %s149, 24 [#allocation5]
        %v523 = vld [vmem:[%s522] sm:$0x3]
        %v524 = vstv %s193
        %v525 = vmul.f32 %v524, %v519
        %v526 = vstv %s194
        %v527 = vmul.f32 %v526, %v521
        %v528 = vadd.f32 %v525, %v527
        %v529 = vstv %s195
        %v530 = vadd.f32 %v528, %v529
        %v531 = vstv %s196
        %v532 = vmul.f32 %v531, %v519
        %v533 = vstv %s197
        %v534 = vmul.f32 %v533, %v521
        %v535 = vadd.f32 %v532, %v534
        %v536 = vstv %s198
        %v537 = vadd.f32 %v535, %v536
        %v538 = vstv %s199
        %v539 = vmul.f32 %v538, %v519
        %v540 = vstv %s200
        %v541 = vmul.f32 %v540, %v521
        %v542 = vadd.f32 %v539, %v541
        %v543 = vstv %s201
        %v544 = vadd.f32 %v542, %v543
        %v545 = vmul.f32 %v530, %v530
        %v546 = vmul.f32 %v537, %v537
        %v547 = vadd.f32 %v545, %v546
        %v548 = vmul.f32 %v544, %v544
        %v549 = vadd.f32 %v547, %v548
        %v550 = vrsqrt.pop %v549
        %v551 = vmul.f32 %v550, %v549
        %v552 = vmul.f32 %v551, %v550
        %v553 = vmul.f32 0.5, %v552
        %v554 = vsub.f32 1.5, %v553
        %v555 = vmul.f32 %v550, %v554
        %vm556 = vweird.f32 %v549
        %vm557 = vweird.f32 %v550
        %vm558 = vmor %vm556, %vm557
        %v559 = vsel %vm558, %v550, %v555
        %v560 = vmul.f32 %v530, %v559
        %v561 = vmul.f32 %v537, %v559
        %v562 = vmul.f32 %v544, %v559
        %v563 = vmul.f32 %v416, %v560
        %v564 = vmul.f32 %v418, %v561
        %v565 = vadd.f32 %v563, %v564
        %v566 = vmul.f32 %v421, %v562
        %v567 = vadd.f32 %v565, %v566
        %v568 = vmul.f32 %v567, %v523
        %v569 = vstv %s176
        %v570 = vadd.f32 %v569, %v568
        %571 = vst [vmem:[%s168] sm:$0x3] %v570
        %v572 = vmul.f32 %v434, %v560
        %v573 = vmul.f32 %v436, %v561
        %v574 = vadd.f32 %v572, %v573
        %v575 = vmul.f32 %v439, %v562
        %v576 = vadd.f32 %v574, %v575
        %v577 = vmul.f32 %v576, %v523
        %v578 = vstv %s184
        %v579 = vadd.f32 %v578, %v577
        %s580 = scalar_lea.vmem %s168, 2 [#allocation8]
        %581 = vst [vmem:[%s580] sm:$0x3] %v579
        %v582 = vmul.f32 %v452, %v560
        %v583 = vmul.f32 %v454, %v561
        %v584 = vadd.f32 %v582, %v583
        %v585 = vmul.f32 %v457, %v562
        %v586 = vadd.f32 %v584, %v585
        %v587 = vmul.f32 %v586, %v523
        %v588 = vstv %s192
        %v589 = vadd.f32 %v588, %v587
        %s590 = scalar_lea.vmem %s168, 4 [#allocation8]
        %591 = vst [vmem:[%s590] sm:$0x3] %v589
        %s592 = scalar_lea.vmem %s149, 26 [#allocation5]
        %v593 = vld [vmem:[%s592] sm:$0x3]
        %v594 = vsub.f32 %v593, 0.5
        %v595 = vmul.f32 %v594, 3.5449078
        %s596 = scalar_lea.vmem %s149, 14 [#allocation5]
        %v597 = vld [vmem:[%s596] sm:$0x3]
        %v598 = vadd.f32 %v597, %v595
        %s599 = scalar_lea.vmem %s168, 38 [#allocation8]
        %600 = vst [vmem:[%s599] sm:$0x3] %v598
        %s601 = scalar_lea.vmem %s149, 28 [#allocation5]
        %v602 = vld [vmem:[%s601] sm:$0x3]
        %v603 = vsub.f32 %v602, 0.5
        %v604 = vmul.f32 %v603, 3.5449078
        %s605 = scalar_lea.vmem %s149, 16 [#allocation5]
        %v606 = vld [vmem:[%s605] sm:$0x3]
        %v607 = vadd.f32 %v606, %v604
        %s608 = scalar_lea.vmem %s168, 40 [#allocation8]
        %609 = vst [vmem:[%s608] sm:$0x3] %v607
        %s610 = scalar_lea.vmem %s149, 30 [#allocation5]
        %v611 = vld [vmem:[%s610] sm:$0x3]
        %v612 = vsub.f32 %v611, 0.5
        %v613 = vmul.f32 %v612, 3.5449078
        %s614 = scalar_lea.vmem %s149, 18 [#allocation5]
        %v615 = vld [vmem:[%s614] sm:$0x3]
        %v616 = vadd.f32 %v615, %v613
        %s617 = scalar_lea.vmem %s168, 42 [#allocation8]
        %618 = vst [vmem:[%s617] sm:$0x3] %v616
        %s619 = sand.u32 %s83, 1
        %s620 = scalar_lea.sflag [#allocation7], %s619
        %s621 = sand.u32 %s83, 1
        %s622 = smul.addr %s621, 44
        %s623 = scalar_lea.vmem [#allocation8], %s622
        // Predicated region
        $region29: #{tpu_custom_call.1} parent=23 // pred_check
          %p624 = pneg %p93
        $region30: #{tpu_custom_call.1} parent=23 // pred_check_branch
          %626 = sbr.rel (%p624) target = $region32
        $region31: #{tpu_custom_call.1} parent=23 // pred_region
          %628 = vsyncadd %s620, 0
          %s629 = smul.addr %s37, 22
          %s630 = sadd.s32 %s38, %s629
          %s631 = smul.addr %s630, 2
          %s632 = scalar_lea.hbm %s3, %s631
          %s633 = sshll.u32 %s623, 4
          %s634 = int_to_ptr.vmem [resolvable:$true] %s633
          %s635 = sshll.u32 %s632, 4
          %s636 = int_to_ptr.hbm [resolvable:$true] %s635
          %641 = dma.vmem_to_hbm [thread:$0]  %s634, 704, %s636, %s620, 32, 32, 2
        $region32: #{tpu_custom_call.1} parent=23 // pred_fallthru
          _
      $region24: #{tpu_custom_call.1} parent=5 // pred_fallthru
        _
      %p642 = scmp.le.s32.totalorder 2, %s28
      // Predicated region
      $region33: #{tpu_custom_call.1} parent=5 // pred_check
        %p643 = pneg %p642
      $region34: #{tpu_custom_call.1} parent=5 // pred_check_branch
        %645 = sbr.rel (%p643) target = $region36
      $region35: #{tpu_custom_call.1} parent=5 // pred_region
        %s646 = ssub.s32 %s28, 2
        // Predicated region
        $region37: #{tpu_custom_call.1} parent=35 // pred_check
          %p647 = pneg %p99
        $region38: #{tpu_custom_call.1} parent=35 // pred_check_branch
          %649 = sbr.rel (%p647) target = $region40
        $region39: #{tpu_custom_call.1} parent=35 // pred_region
          %s650 = sand.u32 %s84, 1
          %s651 = scalar_lea.sflag [#allocation7], %s650
          %s652 = sand.u32 %s84, 1
          %s653 = smul.addr %s652, 44
          %s654 = scalar_lea.vmem [#allocation8], %s653
          %656 = dma.done %s651, 704
        $region40: #{tpu_custom_call.1} parent=35 // pred_fallthru
          _
      $region36: #{tpu_custom_call.1} parent=5 // pred_fallthru
        _
    $region6: #{tpu_custom_call.1} parent=1 // loop_footer
      %s32 = sadd.s32 1, %s28
    $region7: #{tpu_custom_call.1} parent=1 // loop_footer_branch
      %27 = sbr.rel target = $region3
    $region8: #{tpu_custom_call.1} parent=1 // loop_exit
      _
    %657 = vsyncpa [#allocation6], 1
    %s658 = scalar_lea.sflag [#allocation6], 1
    %659 = vsyncpa %s658, 1
    %660 = vsyncpa [#allocation7], 1
    %s661 = scalar_lea.sflag [#allocation7], 1
    %662 = vsyncpa %s661, 1

</llo_original>
